<compile_context>
chip_gen: v7x
topology: tpu7x:2x2x1
jax: 0.10.0
libtpu: 0.0.40
codegen_flags: <defaults>
</compile_context>

<pallas_src>
import jax
import jax.numpy as jnp
from jax import lax
from jax.experimental import pallas as pl
from jax.experimental.pallas import tpu as pltpu
import numpy as np


# ----------------------------------------------------------------------------
# Fused kernel: bidirectional LSTM + additive attention + linear decoder
# ----------------------------------------------------------------------------
def _jw_fused_kernel(x_ref, w_in_ref, b_in_ref, w_hh_ref,
                     k2h_w_ref, k2h_b_ref, h2e_ref, dec_w_ref, dec_b_ref,
                     pred_ref, hidden_ref, o_ref, gin_ref):
    Bp, H2 = hidden_ref.shape            # padded batch (multiple of 8), 2H
    H = H2 // 2
    TB = x_ref.shape[0]                  # T * Bp (time-major, flattened)
    T = TB // Bp

    # ---- hoisted input projection: one bf16 MXU matmul + one bias add -------
    # gin columns (init-time permutation): [i_f i_b | f_f f_b | g_f g_b | o_f o_b]
    # gin row block s = [fwd gates for time s | bwd gates for time T-1-s]
    # (x columns E:2E hold the time-reversed embeddings).
    gin_ref[...] = (jnp.dot(x_ref[...], w_in_ref[...],
                            preferred_element_type=jnp.float32)
                    + b_in_ref[...])

    w_hh = w_hh_ref[...]                 # (2H, 8H) bf16, permuted block-diag

    # ---- fused fwd+bwd recurrence, fully unrolled (T is static) -------------
    # One bf16 recurrent matmul per step; the cell runs once on 2H-wide values
    # (lanes 0:H = fwd direction, lanes H:2H = bwd direction).
    h = jnp.zeros((Bp, H2), jnp.float32)
    c = jnp.zeros((Bp, H2), jnp.float32)
    hs = []
    for s in range(T):
        if s == 0:
            g = gin_ref[0:Bp, :]                                   # rec == 0
        else:
            rec = jnp.dot(h.astype(jnp.bfloat16), w_hh,
                          preferred_element_type=jnp.float32)      # (Bp, 8H)
            g = gin_ref[s * Bp:(s + 1) * Bp, :] + rec
        i_g = jax.nn.sigmoid(g[:, 0:H2])
        f_g = jax.nn.sigmoid(g[:, H2:2 * H2])
        g_g = jnp.tanh(g[:, 2 * H2:3 * H2])
        o_g = jax.nn.sigmoid(g[:, 3 * H2:4 * H2])
        c = i_g * g_g if s == 0 else f_g * c + i_g * g_g
        h = o_g * jnp.tanh(c)
        hs.append(h)                     # h = [h_fwd(time s) | h_bwd(time T-1-s)]

    # ---- pair directions per time step: o_t = [h_fwd(t) | h_bwd(t)] ---------
    # Both halves stay at their original lane positions -> cheap lane selects.
    o_blocks = [jnp.concatenate([hs[t][:, 0:H], hs[T - 1 - t][:, H:H2]], axis=1)
                for t in range(T)]

    # Single lane-dense bulk store of the RNN outputs: (Bp, T*2H).
    o_ref[...] = jnp.concatenate(o_blocks, axis=1)

    # ---- additive attention (the learned query is unused in the module) -----
    o_all = jnp.concatenate(o_blocks, axis=0)                      # (T*Bp, 2H)
    h_att = jnp.tanh(jnp.dot(o_all, k2h_w_ref[...],
                             preferred_element_type=jnp.float32)
                     + k2h_b_ref[...])                             # (T*Bp, Hh)
    # energy via VPU multiply + lane reduction (no N=1 MXU matmul)
    e_flat = jnp.sum(h_att * h2e_ref[...], axis=-1, keepdims=True)  # (T*Bp, 1)

    # Softmax over time, kept in per-time (Bp, 1) blocks (no (Bp, T) relayout).
    e_b = [e_flat[s * Bp:(s + 1) * Bp, :] for s in range(T)]
    m = e_b[0]
    for s in range(1, T):
        m = jnp.maximum(m, e_b[s])
    p_b = [jnp.exp(e_b[s] - m) for s in range(T)]
    denom = p_b[0]
    for s in range(1, T):
        denom = denom + p_b[s]
    inv = pl.reciprocal(denom, approx=True)                        # (Bp, 1)

    # Context = (sum_t p_t * o_t) * inv  (normalization factored out of the sum)
    ctx = p_b[0] * o_blocks[0]
    for t in range(1, T):
        ctx = ctx + p_b[t] * o_blocks[t]
    hidden = ctx * inv                                             # (Bp, 2H)

    hidden_ref[...] = hidden
    pred_ref[...] = (jnp.dot(hidden, dec_w_ref[...],
                             preferred_element_type=jnp.float32)
                     + dec_b_ref[...])


# ----------------------------------------------------------------------------
# One-time parameter repacking (gate permutation, block-diag W_hh, bf16 casts).
# Call ONCE outside the jitted forward.
# ----------------------------------------------------------------------------
def pack_params(params):
    E = params['wih_f'].shape[0]
    H = params['whh_f'].shape[0]
    w_in = jnp.zeros((2 * E, 8 * H), jnp.float32)
    w_hh = jnp.zeros((2 * H, 8 * H), jnp.float32)
    b_in = jnp.zeros((1, 8 * H), jnp.float32)
    for g in range(4):                       # gate order: i, f, g, o
        cf = slice(2 * g * H, (2 * g + 1) * H)        # fwd-direction columns
        cb = slice((2 * g + 1) * H, (2 * g + 2) * H)  # bwd-direction columns
        sg = slice(g * H, (g + 1) * H)
        w_in = w_in.at[0:E, cf].set(params['wih_f'][:, sg])
        w_in = w_in.at[E:2 * E, cb].set(params['wih_b'][:, sg])
        w_hh = w_hh.at[0:H, cf].set(params['whh_f'][:, sg])
        w_hh = w_hh.at[H:2 * H, cb].set(params['whh_b'][:, sg])
        b_in = b_in.at[:, cf].set(params['b_f'][:, sg])
        b_in = b_in.at[:, cb].set(params['b_b'][:, sg])
    return {
        'embedding': params['embedding'],
        'w_in': w_in.astype(jnp.bfloat16),   # (2E, 8H)
        'b_in': b_in,                        # (1, 8H)
        'w_hh': w_hh.astype(jnp.bfloat16),   # (2H, 8H)
        'k2h_w': params['k2h_w'],            # (2H, Hh)
        'k2h_b': params['k2h_b'],            # (1, Hh)
        'h2e_row': params['h2e_w'].T,        # (1, Hh)
        'dec_w': params['dec_w'],            # (2H, C)
        'dec_b': params['dec_b'],            # (1, C)
    }


# ----------------------------------------------------------------------------
# Full forward (wrapper does the embedding gather and the output reshapes only)
# ----------------------------------------------------------------------------
def jw_attention_forward(packed, inputs, *, padding_idx=0):
    B, T = inputs.shape
    emb = packed['embedding']
    E = emb.shape[1]
    H2 = packed['w_hh'].shape[0]             # 2H
    H = H2 // 2
    C = packed['dec_w'].shape[1]

    # Pad token ids (not activations) to a sublane multiple before the gather.
    Bp = max(8, -(-B // 8) * 8)
    ids = inputs
    if Bp != B:
        ids = jnp.pad(inputs, ((0, Bp - B), (0, 0)), constant_values=padding_idx)
    ids_t = ids.T                                         # (T, Bp) time-major
    ids2 = jnp.stack([ids_t, ids_t[::-1]], axis=-1)       # (T, Bp, 2): [t, T-1-t]
    x4 = jnp.take(emb, ids2, axis=0)                      # (T, Bp, 2, E) f32
    x_cat = x4.reshape(T * Bp, 2 * E).astype(jnp.bfloat16)  # [x(t) | x(T-1-t)]

    pred_p, hidden_p, o_slab = pl.pallas_call(
        _jw_fused_kernel,
        out_shape=(jax.ShapeDtypeStruct((Bp, C), jnp.float32),
                   jax.ShapeDtypeStruct((Bp, H2), jnp.float32),
                   jax.ShapeDtypeStruct((Bp, T * H2), jnp.float32)),
        scratch_shapes=[pltpu.VMEM((T * Bp, 4 * H2), jnp.float32)],  # gin (T*Bp, 8H)
    )(x_cat, packed['w_in'], packed['b_in'], packed['w_hh'],
      packed['k2h_w'], packed['k2h_b'], packed['h2e_row'],
      packed['dec_w'], packed['dec_b'])

    pred = pred_p[:B]
    hidden = hidden_p[:B]
    # lane-dense slab (Bp, T*2H) -> (T, B, 2H) rnn outputs
    hiddens = jnp.transpose(o_slab.reshape(Bp, T, H2), (1, 0, 2))[:, :B, :]
    e_bte = jnp.transpose(x4[:, :B, 0, :], (1, 0, 2))     # (B, T, E) embeddings
    return pred, {'embeddings': e_bte, 'encoded': hidden, 'hiddens': hiddens}


# ----------------------------------------------------------------------------
# Pure-JAX reference (same math, f32, no Pallas) for the correctness check
# ----------------------------------------------------------------------------
def reference_forward(params, inputs):
    e = jnp.take(params['embedding'], inputs, axis=0)
    x = jnp.transpose(e, (1, 0, 2))
    H = params['whh_f'].shape[0]
    B = x.shape[1]

    def make_cell(wih, whh, b):
        def f(carry, x_t):
            h, c = carry
            g = x_t @ wih + h @ whh + b
            i = jax.nn.sigmoid(g[:, :H])
            fg = jax.nn.sigmoid(g[:, H:2 * H])
            gg = jnp.tanh(g[:, 2 * H:3 * H])
            og = jax.nn.sigmoid(g[:, 3 * H:])
            c = fg * c + i * gg
            h = og * jnp.tanh(c)
            return (h, c), h
        return f

    init = (jnp.zeros((B, H)), jnp.zeros((B, H)))
    _, of = lax.scan(make_cell(params['wih_f'], params['whh_f'], params['b_f']),
                     init, x)
    _, ob = lax.scan(make_cell(params['wih_b'], params['whh_b'], params['b_b']),
                     init, x[::-1])
    ob = ob[::-1]
    o = jnp.concatenate([of, ob], axis=-1)               # (T, B, 2H)
    o_bta = jnp.transpose(o, (1, 0, 2))
    h = jnp.tanh(o_bta @ params['k2h_w'] + params['k2h_b'])
    en = (h @ params['h2e_w'])[..., 0]                   # (B, T)
    attn = jax.nn.softmax(en, axis=1)
    hidden = jnp.einsum('bt,bta->ba', attn, o_bta)
    pred = hidden @ params['dec_w'] + params['dec_b']
    return pred, hidden, o


# ----------------------------------------------------------------------------
# Deterministic parameter init (shapes follow the nn.Module __init__)
# ----------------------------------------------------------------------------
def init_params(key, num_tokens, padding_idx, E, H, num_targets):
    A = 2 * H          # attention_dim (bidirectional)
    Hh = A // 2        # AdditiveAttention hidden dim
    ks = jax.random.split(key, 12)
    k_lstm = 1.0 / np.sqrt(H)

    def u(k, shape, bound):
        return jax.random.uniform(k, shape, jnp.float32, -bound, bound)

    emb = 0.1 * jax.random.normal(ks[0], (num_tokens, E), jnp.float32)
    emb = emb.at[padding_idx].set(0.0)

    params = {
        'embedding': emb,
        # LSTM weights stored pre-transposed: x @ W_ih^T == x @ wih
        'wih_f': u(ks[1], (E, 4 * H), k_lstm),
        'whh_f': u(ks[2], (H, 4 * H), k_lstm),
        'b_f':   u(ks[3], (1, 4 * H), k_lstm) + u(ks[4], (1, 4 * H), k_lstm),
        'wih_b': u(ks[5], (E, 4 * H), k_lstm),
        'whh_b': u(ks[6], (H, 4 * H), k_lstm),
        'b_b':   u(ks[7], (1, 4 * H), k_lstm) + u(ks[8], (1, 4 * H), k_lstm),
        # AdditiveAttention: k2h = Linear(A, A//2), h2e = Linear(A//2, 1, bias=False)
        'k2h_w': u(ks[9], (A, Hh), 1.0 / np.sqrt(A)),
        'k2h_b': u(ks[10], (1, Hh), 1.0 / np.sqrt(A)),
        'h2e_w': u(ks[11], (Hh, 1), 1.0 / np.sqrt(Hh)),
        # decoder = Linear(A, num_targets)
        'dec_w': u(jax.random.fold_in(key, 100), (A, num_targets), 1.0 / np.sqrt(A)),
        'dec_b': u(jax.random.fold_in(key, 101), (1, num_targets), 1.0 / np.sqrt(A)),
    }
    return params


if __name__ == "__main__":
    # Small config: batch=2, seq=8, embedding_dim=32, hidden_dim=32, bi=True,
    # num_layers=1, num_tokens=100, num_targets=3.
    B, T, E, H = 2, 8, 32, 32
    NUM_TOKENS, PAD_IDX, NUM_TARGETS = 100, 0, 3

    key = jax.random.PRNGKey(0)
    pkey, ikey = jax.random.split(key)
    params = init_params(pkey, NUM_TOKENS, PAD_IDX, E, H, NUM_TARGETS)
    packed = pack_params(params)        # one-time repack, outside the jitted fwd
    inputs = jax.random.randint(ikey, (B, T), 1, NUM_TOKENS, dtype=jnp.int32)

    fwd = jax.jit(jw_attention_forward, static_argnames=('padding_idx',))
    pred, out_dict = fwd(packed, inputs, padding_idx=PAD_IDX)
    pred = jax.block_until_ready(pred)
    hidden = jax.block_until_ready(out_dict['encoded'])
    hiddens = jax.block_until_ready(out_dict['hiddens'])

    # Sanity check against a pure-JAX f32 reference of the same math.
    ref_pred, ref_hidden, ref_o = reference_forward(params, inputs)
    assert pred.shape == (B, NUM_TARGETS)
    assert hidden.shape == (B, 2 * H)
    assert hiddens.shape == (T, B, 2 * H)
    np.testing.assert_allclose(np.asarray(pred), np.asarray(ref_pred),
                               rtol=1e-2, atol=1e-2)
    np.testing.assert_allclose(np.asarray(hidden), np.asarray(ref_hidden),
                               rtol=1e-2, atol=1e-2)
    np.testing.assert_allclose(np.asarray(hiddens), np.asarray(ref_o),
                               rtol=1e-2, atol=1e-2)

    print("KERNEL_OK")
</pallas_src>

<mosaic_0001>
module attributes {stable_mosaic.version = 11 : i64} {
  func.func @_jw_fused_kernel(%arg0: memref<64x64xbf16, #tpu.memory_space<vmem>>, %arg1: memref<64x256xbf16, #tpu.memory_space<vmem>>, %arg2: memref<1x256xf32, #tpu.memory_space<vmem>>, %arg3: memref<64x256xbf16, #tpu.memory_space<vmem>>, %arg4: memref<64x32xf32, #tpu.memory_space<vmem>>, %arg5: memref<1x32xf32, #tpu.memory_space<vmem>>, %arg6: memref<1x32xf32, #tpu.memory_space<vmem>>, %arg7: memref<64x3xf32, #tpu.memory_space<vmem>>, %arg8: memref<1x3xf32, #tpu.memory_space<vmem>>, %arg9: memref<8x3xf32, #tpu.memory_space<vmem>>, %arg10: memref<8x64xf32, #tpu.memory_space<vmem>>, %arg11: memref<8x512xf32, #tpu.memory_space<vmem>>, %arg12: memref<64x256xf32, #tpu.memory_space<vmem>>) attributes {dimension_semantics = [], scalar_prefetch = 0 : i64, scratch_operands = 1 : i64, tpu.core_type = #tpu.core_type<tc>} {
    %c0 = arith.constant 0 : index
    %c0_0 = arith.constant 0 : index
    %0 = vector.load %arg0[%c0, %c0_0] : memref<64x64xbf16, #tpu.memory_space<vmem>>, vector<64x64xbf16>
    %c0_1 = arith.constant 0 : index
    %c0_2 = arith.constant 0 : index
    %1 = vector.load %arg1[%c0_1, %c0_2] : memref<64x256xbf16, #tpu.memory_space<vmem>>, vector<64x256xbf16>
    %cst = arith.constant dense<0.000000e+00> : vector<64x256xf32>
    %2 = tpu.matmul %0, %1, %cst {dimension_numbers = #tpu.dot_dimension_numbers<[1], [0], [0], [1], [0, 0, 1, 1], [], []>} : vector<64x64xbf16>, vector<64x256xbf16>, vector<64x256xf32> -> vector<64x256xf32>
    %c0_3 = arith.constant 0 : index
    %c0_4 = arith.constant 0 : index
    %3 = vector.load %arg2[%c0_3, %c0_4] : memref<1x256xf32, #tpu.memory_space<vmem>>, vector<1x256xf32>
    %4 = vector.broadcast %3 : vector<1x256xf32> to vector<64x256xf32>
    %5 = arith.addf %2, %4 : vector<64x256xf32>
    %c0_5 = arith.constant 0 : index
    %c0_6 = arith.constant 0 : index
    %6 = vector.load %arg12[%c0_5, %c0_6] : memref<64x256xf32, #tpu.memory_space<vmem>>, vector<64x256xf32>
    tpu.vector_store %arg12[%c0_5, %c0_6], %5 {strides = array<i32>} : memref<64x256xf32, #tpu.memory_space<vmem>>, vector<64x256xf32>,
    %c0_7 = arith.constant 0 : index
    %c0_8 = arith.constant 0 : index
    %7 = vector.load %arg3[%c0_7, %c0_8] : memref<64x256xbf16, #tpu.memory_space<vmem>>, vector<64x256xbf16>
    %c0_9 = arith.constant 0 : index
    %c0_10 = arith.constant 0 : index
    %8 = vector.load %arg12[%c0_9, %c0_10] : memref<64x256xf32, #tpu.memory_space<vmem>>, vector<8x256xf32>
    %9 = vector.extract_strided_slice %8 {offsets = [0, 0], sizes = [8, 64], strides = [1, 1]} : vector<8x256xf32> to vector<8x64xf32>
    %10 = arith.negf %9 : vector<8x64xf32>
    %11 = math.exp %10 : vector<8x64xf32>
    %cst_11 = arith.constant 1.000000e+00 : f32
    %12 = vector.broadcast %cst_11 : f32 to vector<8x64xf32>
    %13 = arith.addf %12, %11 : vector<8x64xf32>
    %14 = arith.divf %12, %13 : vector<8x64xf32>
    %15 = vector.extract_strided_slice %8 {offsets = [0, 128], sizes = [8, 64], strides = [1, 1]} : vector<8x256xf32> to vector<8x64xf32>
    %16 = math.tanh %15 : vector<8x64xf32>
    %17 = vector.extract_strided_slice %8 {offsets = [0, 192], sizes = [8, 64], strides = [1, 1]} : vector<8x256xf32> to vector<8x64xf32>
    %18 = arith.negf %17 : vector<8x64xf32>
    %19 = math.exp %18 : vector<8x64xf32>
    %cst_12 = arith.constant 1.000000e+00 : f32
    %20 = vector.broadcast %cst_12 : f32 to vector<8x64xf32>
    %21 = arith.addf %20, %19 : vector<8x64xf32>
    %22 = arith.divf %20, %21 : vector<8x64xf32>
    %23 = arith.mulf %14, %16 : vector<8x64xf32>
    %24 = math.tanh %23 : vector<8x64xf32>
    %25 = arith.mulf %22, %24 : vector<8x64xf32>
    %26 = arith.truncf %25 : vector<8x64xf32> to vector<8x64xbf16>
    %cst_13 = arith.constant dense<0.000000e+00> : vector<8x256xf32>
    %27 = tpu.matmul %26, %7, %cst_13 {dimension_numbers = #tpu.dot_dimension_numbers<[1], [0], [0], [1], [0, 0, 1, 1], [], []>} : vector<8x64xbf16>, vector<64x256xbf16>, vector<8x256xf32> -> vector<8x256xf32>
    %c8 = arith.constant 8 : index
    %c0_14 = arith.constant 0 : index
    %28 = vector.load %arg12[%c8, %c0_14] : memref<64x256xf32, #tpu.memory_space<vmem>>, vector<8x256xf32>
    %29 = arith.addf %28, %27 : vector<8x256xf32>
    %30 = vector.extract_strided_slice %29 {offsets = [0, 0], sizes = [8, 64], strides = [1, 1]} : vector<8x256xf32> to vector<8x64xf32>
    %31 = arith.negf %30 : vector<8x64xf32>
    %32 = math.exp %31 : vector<8x64xf32>
    %cst_15 = arith.constant 1.000000e+00 : f32
    %33 = vector.broadcast %cst_15 : f32 to vector<8x64xf32>
    %34 = arith.addf %33, %32 : vector<8x64xf32>
    %35 = arith.divf %33, %34 : vector<8x64xf32>
    %36 = vector.extract_strided_slice %29 {offsets = [0, 64], sizes = [8, 64], strides = [1, 1]} : vector<8x256xf32> to vector<8x64xf32>
    %37 = arith.negf %36 : vector<8x64xf32>
    %38 = math.exp %37 : vector<8x64xf32>
    %cst_16 = arith.constant 1.000000e+00 : f32
    %39 = vector.broadcast %cst_16 : f32 to vector<8x64xf32>
    %40 = arith.addf %39, %38 : vector<8x64xf32>
    %41 = arith.divf %39, %40 : vector<8x64xf32>
    %42 = vector.extract_strided_slice %29 {offsets = [0, 128], sizes = [8, 64], strides = [1, 1]} : vector<8x256xf32> to vector<8x64xf32>
    %43 = math.tanh %42 : vector<8x64xf32>
    %44 = vector.extract_strided_slice %29 {offsets = [0, 192], sizes = [8, 64], strides = [1, 1]} : vector<8x256xf32> to vector<8x64xf32>
    %45 = arith.negf %44 : vector<8x64xf32>
    %46 = math.exp %45 : vector<8x64xf32>
    %cst_17 = arith.constant 1.000000e+00 : f32
    %47 = vector.broadcast %cst_17 : f32 to vector<8x64xf32>
    %48 = arith.addf %47, %46 : vector<8x64xf32>
    %49 = arith.divf %47, %48 : vector<8x64xf32>
    %50 = arith.mulf %41, %23 : vector<8x64xf32>
    %51 = arith.mulf %35, %43 : vector<8x64xf32>
    %52 = arith.addf %50, %51 : vector<8x64xf32>
    %53 = math.tanh %52 : vector<8x64xf32>
    %54 = arith.mulf %49, %53 : vector<8x64xf32>
    %55 = arith.truncf %54 : vector<8x64xf32> to vector<8x64xbf16>
    %cst_18 = arith.constant dense<0.000000e+00> : vector<8x256xf32>
    %56 = tpu.matmul %55, %7, %cst_18 {dimension_numbers = #tpu.dot_dimension_numbers<[1], [0], [0], [1], [0, 0, 1, 1], [], []>} : vector<8x64xbf16>, vector<64x256xbf16>, vector<8x256xf32> -> vector<8x256xf32>
    %c16 = arith.constant 16 : index
    %c0_19 = arith.constant 0 : index
    %57 = vector.load %arg12[%c16, %c0_19] : memref<64x256xf32, #tpu.memory_space<vmem>>, vector<8x256xf32>
    %58 = arith.addf %57, %56 : vector<8x256xf32>
    %59 = vector.extract_strided_slice %58 {offsets = [0, 0], sizes = [8, 64], strides = [1, 1]} : vector<8x256xf32> to vector<8x64xf32>
    %60 = arith.negf %59 : vector<8x64xf32>
    %61 = math.exp %60 : vector<8x64xf32>
    %cst_20 = arith.constant 1.000000e+00 : f32
    %62 = vector.broadcast %cst_20 : f32 to vector<8x64xf32>
    %63 = arith.addf %62, %61 : vector<8x64xf32>
    %64 = arith.divf %62, %63 : vector<8x64xf32>
    %65 = vector.extract_strided_slice %58 {offsets = [0, 64], sizes = [8, 64], strides = [1, 1]} : vector<8x256xf32> to vector<8x64xf32>
    %66 = arith.negf %65 : vector<8x64xf32>
    %67 = math.exp %66 : vector<8x64xf32>
    %cst_21 = arith.constant 1.000000e+00 : f32
    %68 = vector.broadcast %cst_21 : f32 to vector<8x64xf32>
    %69 = arith.addf %68, %67 : vector<8x64xf32>
    %70 = arith.divf %68, %69 : vector<8x64xf32>
    %71 = vector.extract_strided_slice %58 {offsets = [0, 128], sizes = [8, 64], strides = [1, 1]} : vector<8x256xf32> to vector<8x64xf32>
    %72 = math.tanh %71 : vector<8x64xf32>
    %73 = vector.extract_strided_slice %58 {offsets = [0, 192], sizes = [8, 64], strides = [1, 1]} : vector<8x256xf32> to vector<8x64xf32>
    %74 = arith.negf %73 : vector<8x64xf32>
    %75 = math.exp %74 : vector<8x64xf32>
    %cst_22 = arith.constant 1.000000e+00 : f32
    %76 = vector.broadcast %cst_22 : f32 to vector<8x64xf32>
    %77 = arith.addf %76, %75 : vector<8x64xf32>
    %78 = arith.divf %76, %77 : vector<8x64xf32>
    %79 = arith.mulf %70, %52 : vector<8x64xf32>
    %80 = arith.mulf %64, %72 : vector<8x64xf32>
    %81 = arith.addf %79, %80 : vector<8x64xf32>
    %82 = math.tanh %81 : vector<8x64xf32>
    %83 = arith.mulf %78, %82 : vector<8x64xf32>
    %84 = arith.truncf %83 : vector<8x64xf32> to vector<8x64xbf16>
    %cst_23 = arith.constant dense<0.000000e+00> : vector<8x256xf32>
    %85 = tpu.matmul %84, %7, %cst_23 {dimension_numbers = #tpu.dot_dimension_numbers<[1], [0], [0], [1], [0, 0, 1, 1], [], []>} : vector<8x64xbf16>, vector<64x256xbf16>, vector<8x256xf32> -> vector<8x256xf32>
    %c24 = arith.constant 24 : index
    %c0_24 = arith.constant 0 : index
    %86 = vector.load %arg12[%c24, %c0_24] : memref<64x256xf32, #tpu.memory_space<vmem>>, vector<8x256xf32>
    %87 = arith.addf %86, %85 : vector<8x256xf32>
    %88 = vector.extract_strided_slice %87 {offsets = [0, 0], sizes = [8, 64], strides = [1, 1]} : vector<8x256xf32> to vector<8x64xf32>
    %89 = arith.negf %88 : vector<8x64xf32>
    %90 = math.exp %89 : vector<8x64xf32>
    %cst_25 = arith.constant 1.000000e+00 : f32
    %91 = vector.broadcast %cst_25 : f32 to vector<8x64xf32>
    %92 = arith.addf %91, %90 : vector<8x64xf32>
    %93 = arith.divf %91, %92 : vector<8x64xf32>
    %94 = vector.extract_strided_slice %87 {offsets = [0, 64], sizes = [8, 64], strides = [1, 1]} : vector<8x256xf32> to vector<8x64xf32>
    %95 = arith.negf %94 : vector<8x64xf32>
    %96 = math.exp %95 : vector<8x64xf32>
    %cst_26 = arith.constant 1.000000e+00 : f32
    %97 = vector.broadcast %cst_26 : f32 to vector<8x64xf32>
    %98 = arith.addf %97, %96 : vector<8x64xf32>
    %99 = arith.divf %97, %98 : vector<8x64xf32>
    %100 = vector.extract_strided_slice %87 {offsets = [0, 128], sizes = [8, 64], strides = [1, 1]} : vector<8x256xf32> to vector<8x64xf32>
    %101 = math.tanh %100 : vector<8x64xf32>
    %102 = vector.extract_strided_slice %87 {offsets = [0, 192], sizes = [8, 64], strides = [1, 1]} : vector<8x256xf32> to vector<8x64xf32>
    %103 = arith.negf %102 : vector<8x64xf32>
    %104 = math.exp %103 : vector<8x64xf32>
    %cst_27 = arith.constant 1.000000e+00 : f32
    %105 = vector.broadcast %cst_27 : f32 to vector<8x64xf32>
    %106 = arith.addf %105, %104 : vector<8x64xf32>
    %107 = arith.divf %105, %106 : vector<8x64xf32>
    %108 = arith.mulf %99, %81 : vector<8x64xf32>
    %109 = arith.mulf %93, %101 : vector<8x64xf32>
    %110 = arith.addf %108, %109 : vector<8x64xf32>
    %111 = math.tanh %110 : vector<8x64xf32>
    %112 = arith.mulf %107, %111 : vector<8x64xf32>
    %113 = arith.truncf %112 : vector<8x64xf32> to vector<8x64xbf16>
    %cst_28 = arith.constant dense<0.000000e+00> : vector<8x256xf32>
    %114 = tpu.matmul %113, %7, %cst_28 {dimension_numbers = #tpu.dot_dimension_numbers<[1], [0], [0], [1], [0, 0, 1, 1], [], []>} : vector<8x64xbf16>, vector<64x256xbf16>, vector<8x256xf32> -> vector<8x256xf32>
    %c32 = arith.constant 32 : index
    %c0_29 = arith.constant 0 : index
    %115 = vector.load %arg12[%c32, %c0_29] : memref<64x256xf32, #tpu.memory_space<vmem>>, vector<8x256xf32>
    %116 = arith.addf %115, %114 : vector<8x256xf32>
    %117 = vector.extract_strided_slice %116 {offsets = [0, 0], sizes = [8, 64], strides = [1, 1]} : vector<8x256xf32> to vector<8x64xf32>
    %118 = arith.negf %117 : vector<8x64xf32>
    %119 = math.exp %118 : vector<8x64xf32>
    %cst_30 = arith.constant 1.000000e+00 : f32
    %120 = vector.broadcast %cst_30 : f32 to vector<8x64xf32>
    %121 = arith.addf %120, %119 : vector<8x64xf32>
    %122 = arith.divf %120, %121 : vector<8x64xf32>
    %123 = vector.extract_strided_slice %116 {offsets = [0, 64], sizes = [8, 64], strides = [1, 1]} : vector<8x256xf32> to vector<8x64xf32>
    %124 = arith.negf %123 : vector<8x64xf32>
    %125 = math.exp %124 : vector<8x64xf32>
    %cst_31 = arith.constant 1.000000e+00 : f32
    %126 = vector.broadcast %cst_31 : f32 to vector<8x64xf32>
    %127 = arith.addf %126, %125 : vector<8x64xf32>
    %128 = arith.divf %126, %127 : vector<8x64xf32>
    %129 = vector.extract_strided_slice %116 {offsets = [0, 128], sizes = [8, 64], strides = [1, 1]} : vector<8x256xf32> to vector<8x64xf32>
    %130 = math.tanh %129 : vector<8x64xf32>
    %131 = vector.extract_strided_slice %116 {offsets = [0, 192], sizes = [8, 64], strides = [1, 1]} : vector<8x256xf32> to vector<8x64xf32>
    %132 = arith.negf %131 : vector<8x64xf32>
    %133 = math.exp %132 : vector<8x64xf32>
    %cst_32 = arith.constant 1.000000e+00 : f32
    %134 = vector.broadcast %cst_32 : f32 to vector<8x64xf32>
    %135 = arith.addf %134, %133 : vector<8x64xf32>
    %136 = arith.divf %134, %135 : vector<8x64xf32>
    %137 = arith.mulf %128, %110 : vector<8x64xf32>
    %138 = arith.mulf %122, %130 : vector<8x64xf32>
    %139 = arith.addf %137, %138 : vector<8x64xf32>
    %140 = math.tanh %139 : vector<8x64xf32>
    %141 = arith.mulf %136, %140 : vector<8x64xf32>
    %142 = arith.truncf %141 : vector<8x64xf32> to vector<8x64xbf16>
    %cst_33 = arith.constant dense<0.000000e+00> : vector<8x256xf32>
    %143 = tpu.matmul %142, %7, %cst_33 {dimension_numbers = #tpu.dot_dimension_numbers<[1], [0], [0], [1], [0, 0, 1, 1], [], []>} : vector<8x64xbf16>, vector<64x256xbf16>, vector<8x256xf32> -> vector<8x256xf32>
    %c40 = arith.constant 40 : index
    %c0_34 = arith.constant 0 : index
    %144 = vector.load %arg12[%c40, %c0_34] : memref<64x256xf32, #tpu.memory_space<vmem>>, vector<8x256xf32>
    %145 = arith.addf %144, %143 : vector<8x256xf32>
    %146 = vector.extract_strided_slice %145 {offsets = [0, 0], sizes = [8, 64], strides = [1, 1]} : vector<8x256xf32> to vector<8x64xf32>
    %147 = arith.negf %146 : vector<8x64xf32>
    %148 = math.exp %147 : vector<8x64xf32>
    %cst_35 = arith.constant 1.000000e+00 : f32
    %149 = vector.broadcast %cst_35 : f32 to vector<8x64xf32>
    %150 = arith.addf %149, %148 : vector<8x64xf32>
    %151 = arith.divf %149, %150 : vector<8x64xf32>
    %152 = vector.extract_strided_slice %145 {offsets = [0, 64], sizes = [8, 64], strides = [1, 1]} : vector<8x256xf32> to vector<8x64xf32>
    %153 = arith.negf %152 : vector<8x64xf32>
    %154 = math.exp %153 : vector<8x64xf32>
    %cst_36 = arith.constant 1.000000e+00 : f32
    %155 = vector.broadcast %cst_36 : f32 to vector<8x64xf32>
    %156 = arith.addf %155, %154 : vector<8x64xf32>
    %157 = arith.divf %155, %156 : vector<8x64xf32>
    %158 = vector.extract_strided_slice %145 {offsets = [0, 128], sizes = [8, 64], strides = [1, 1]} : vector<8x256xf32> to vector<8x64xf32>
    %159 = math.tanh %158 : vector<8x64xf32>
    %160 = vector.extract_strided_slice %145 {offsets = [0, 192], sizes = [8, 64], strides = [1, 1]} : vector<8x256xf32> to vector<8x64xf32>
    %161 = arith.negf %160 : vector<8x64xf32>
    %162 = math.exp %161 : vector<8x64xf32>
    %cst_37 = arith.constant 1.000000e+00 : f32
    %163 = vector.broadcast %cst_37 : f32 to vector<8x64xf32>
    %164 = arith.addf %163, %162 : vector<8x64xf32>
    %165 = arith.divf %163, %164 : vector<8x64xf32>
    %166 = arith.mulf %157, %139 : vector<8x64xf32>
    %167 = arith.mulf %151, %159 : vector<8x64xf32>
    %168 = arith.addf %166, %167 : vector<8x64xf32>
    %169 = math.tanh %168 : vector<8x64xf32>
    %170 = arith.mulf %165, %169 : vector<8x64xf32>
    %171 = arith.truncf %170 : vector<8x64xf32> to vector<8x64xbf16>
    %cst_38 = arith.constant dense<0.000000e+00> : vector<8x256xf32>
    %172 = tpu.matmul %171, %7, %cst_38 {dimension_numbers = #tpu.dot_dimension_numbers<[1], [0], [0], [1], [0, 0, 1, 1], [], []>} : vector<8x64xbf16>, vector<64x256xbf16>, vector<8x256xf32> -> vector<8x256xf32>
    %c48 = arith.constant 48 : index
    %c0_39 = arith.constant 0 : index
    %173 = vector.load %arg12[%c48, %c0_39] : memref<64x256xf32, #tpu.memory_space<vmem>>, vector<8x256xf32>
    %174 = arith.addf %173, %172 : vector<8x256xf32>
    %175 = vector.extract_strided_slice %174 {offsets = [0, 0], sizes = [8, 64], strides = [1, 1]} : vector<8x256xf32> to vector<8x64xf32>
    %176 = arith.negf %175 : vector<8x64xf32>
    %177 = math.exp %176 : vector<8x64xf32>
    %cst_40 = arith.constant 1.000000e+00 : f32
    %178 = vector.broadcast %cst_40 : f32 to vector<8x64xf32>
    %179 = arith.addf %178, %177 : vector<8x64xf32>
    %180 = arith.divf %178, %179 : vector<8x64xf32>
    %181 = vector.extract_strided_slice %174 {offsets = [0, 64], sizes = [8, 64], strides = [1, 1]} : vector<8x256xf32> to vector<8x64xf32>
    %182 = arith.negf %181 : vector<8x64xf32>
    %183 = math.exp %182 : vector<8x64xf32>
    %cst_41 = arith.constant 1.000000e+00 : f32
    %184 = vector.broadcast %cst_41 : f32 to vector<8x64xf32>
    %185 = arith.addf %184, %183 : vector<8x64xf32>
    %186 = arith.divf %184, %185 : vector<8x64xf32>
    %187 = vector.extract_strided_slice %174 {offsets = [0, 128], sizes = [8, 64], strides = [1, 1]} : vector<8x256xf32> to vector<8x64xf32>
    %188 = math.tanh %187 : vector<8x64xf32>
    %189 = vector.extract_strided_slice %174 {offsets = [0, 192], sizes = [8, 64], strides = [1, 1]} : vector<8x256xf32> to vector<8x64xf32>
    %190 = arith.negf %189 : vector<8x64xf32>
    %191 = math.exp %190 : vector<8x64xf32>
    %cst_42 = arith.constant 1.000000e+00 : f32
    %192 = vector.broadcast %cst_42 : f32 to vector<8x64xf32>
    %193 = arith.addf %192, %191 : vector<8x64xf32>
    %194 = arith.divf %192, %193 : vector<8x64xf32>
    %195 = arith.mulf %186, %168 : vector<8x64xf32>
    %196 = arith.mulf %180, %188 : vector<8x64xf32>
    %197 = arith.addf %195, %196 : vector<8x64xf32>
    %198 = math.tanh %197 : vector<8x64xf32>
    %199 = arith.mulf %194, %198 : vector<8x64xf32>
    %200 = arith.truncf %199 : vector<8x64xf32> to vector<8x64xbf16>
    %cst_43 = arith.constant dense<0.000000e+00> : vector<8x256xf32>
    %201 = tpu.matmul %200, %7, %cst_43 {dimension_numbers = #tpu.dot_dimension_numbers<[1], [0], [0], [1], [0, 0, 1, 1], [], []>} : vector<8x64xbf16>, vector<64x256xbf16>, vector<8x256xf32> -> vector<8x256xf32>
    %c56 = arith.constant 56 : index
    %c0_44 = arith.constant 0 : index
    %202 = vector.load %arg12[%c56, %c0_44] : memref<64x256xf32, #tpu.memory_space<vmem>>, vector<8x256xf32>
    %203 = arith.addf %202, %201 : vector<8x256xf32>
    %204 = vector.extract_strided_slice %203 {offsets = [0, 0], sizes = [8, 64], strides = [1, 1]} : vector<8x256xf32> to vector<8x64xf32>
    %205 = arith.negf %204 : vector<8x64xf32>
    %206 = math.exp %205 : vector<8x64xf32>
    %cst_45 = arith.constant 1.000000e+00 : f32
    %207 = vector.broadcast %cst_45 : f32 to vector<8x64xf32>
    %208 = arith.addf %207, %206 : vector<8x64xf32>
    %209 = arith.divf %207, %208 : vector<8x64xf32>
    %210 = vector.extract_strided_slice %203 {offsets = [0, 64], sizes = [8, 64], strides = [1, 1]} : vector<8x256xf32> to vector<8x64xf32>
    %211 = arith.negf %210 : vector<8x64xf32>
    %212 = math.exp %211 : vector<8x64xf32>
    %cst_46 = arith.constant 1.000000e+00 : f32
    %213 = vector.broadcast %cst_46 : f32 to vector<8x64xf32>
    %214 = arith.addf %213, %212 : vector<8x64xf32>
    %215 = arith.divf %213, %214 : vector<8x64xf32>
    %216 = vector.extract_strided_slice %203 {offsets = [0, 128], sizes = [8, 64], strides = [1, 1]} : vector<8x256xf32> to vector<8x64xf32>
    %217 = math.tanh %216 : vector<8x64xf32>
    %218 = vector.extract_strided_slice %203 {offsets = [0, 192], sizes = [8, 64], strides = [1, 1]} : vector<8x256xf32> to vector<8x64xf32>
    %219 = arith.negf %218 : vector<8x64xf32>
    %220 = math.exp %219 : vector<8x64xf32>
    %cst_47 = arith.constant 1.000000e+00 : f32
    %221 = vector.broadcast %cst_47 : f32 to vector<8x64xf32>
    %222 = arith.addf %221, %220 : vector<8x64xf32>
    %223 = arith.divf %221, %222 : vector<8x64xf32>
    %224 = arith.mulf %215, %197 : vector<8x64xf32>
    %225 = arith.mulf %209, %217 : vector<8x64xf32>
    %226 = arith.addf %224, %225 : vector<8x64xf32>
    %227 = math.tanh %226 : vector<8x64xf32>
    %228 = arith.mulf %223, %227 : vector<8x64xf32>
    %229 = vector.extract_strided_slice %25 {offsets = [0, 0], sizes = [8, 32], strides = [1, 1]} : vector<8x64xf32> to vector<8x32xf32>
    %230 = vector.extract_strided_slice %228 {offsets = [0, 32], sizes = [8, 32], strides = [1, 1]} : vector<8x64xf32> to vector<8x32xf32>
    %231 = tpu.concatenate %229, %230 in 1 : vector<8x32xf32>, vector<8x32xf32> -> vector<8x64xf32>
    %232 = vector.extract_strided_slice %54 {offsets = [0, 0], sizes = [8, 32], strides = [1, 1]} : vector<8x64xf32> to vector<8x32xf32>
    %233 = vector.extract_strided_slice %199 {offsets = [0, 32], sizes = [8, 32], strides = [1, 1]} : vector<8x64xf32> to vector<8x32xf32>
    %234 = tpu.concatenate %232, %233 in 1 : vector<8x32xf32>, vector<8x32xf32> -> vector<8x64xf32>
    %235 = vector.extract_strided_slice %83 {offsets = [0, 0], sizes = [8, 32], strides = [1, 1]} : vector<8x64xf32> to vector<8x32xf32>
    %236 = vector.extract_strided_slice %170 {offsets = [0, 32], sizes = [8, 32], strides = [1, 1]} : vector<8x64xf32> to vector<8x32xf32>
    %237 = tpu.concatenate %235, %236 in 1 : vector<8x32xf32>, vector<8x32xf32> -> vector<8x64xf32>
    %238 = vector.extract_strided_slice %112 {offsets = [0, 0], sizes = [8, 32], strides = [1, 1]} : vector<8x64xf32> to vector<8x32xf32>
    %239 = vector.extract_strided_slice %141 {offsets = [0, 32], sizes = [8, 32], strides = [1, 1]} : vector<8x64xf32> to vector<8x32xf32>
    %240 = tpu.concatenate %238, %239 in 1 : vector<8x32xf32>, vector<8x32xf32> -> vector<8x64xf32>
    %241 = vector.extract_strided_slice %141 {offsets = [0, 0], sizes = [8, 32], strides = [1, 1]} : vector<8x64xf32> to vector<8x32xf32>
    %242 = vector.extract_strided_slice %112 {offsets = [0, 32], sizes = [8, 32], strides = [1, 1]} : vector<8x64xf32> to vector<8x32xf32>
    %243 = tpu.concatenate %241, %242 in 1 : vector<8x32xf32>, vector<8x32xf32> -> vector<8x64xf32>
    %244 = vector.extract_strided_slice %170 {offsets = [0, 0], sizes = [8, 32], strides = [1, 1]} : vector<8x64xf32> to vector<8x32xf32>
    %245 = vector.extract_strided_slice %83 {offsets = [0, 32], sizes = [8, 32], strides = [1, 1]} : vector<8x64xf32> to vector<8x32xf32>
    %246 = tpu.concatenate %244, %245 in 1 : vector<8x32xf32>, vector<8x32xf32> -> vector<8x64xf32>
    %247 = vector.extract_strided_slice %199 {offsets = [0, 0], sizes = [8, 32], strides = [1, 1]} : vector<8x64xf32> to vector<8x32xf32>
    %248 = vector.extract_strided_slice %54 {offsets = [0, 32], sizes = [8, 32], strides = [1, 1]} : vector<8x64xf32> to vector<8x32xf32>
    %249 = tpu.concatenate %247, %248 in 1 : vector<8x32xf32>, vector<8x32xf32> -> vector<8x64xf32>
    %250 = vector.extract_strided_slice %228 {offsets = [0, 0], sizes = [8, 32], strides = [1, 1]} : vector<8x64xf32> to vector<8x32xf32>
    %251 = vector.extract_strided_slice %25 {offsets = [0, 32], sizes = [8, 32], strides = [1, 1]} : vector<8x64xf32> to vector<8x32xf32>
    %252 = tpu.concatenate %250, %251 in 1 : vector<8x32xf32>, vector<8x32xf32> -> vector<8x64xf32>
    %253 = tpu.concatenate %231, %234, %237, %240, %243, %246, %249, %252 in 1 : vector<8x64xf32>, vector<8x64xf32>, vector<8x64xf32>, vector<8x64xf32>, vector<8x64xf32>, vector<8x64xf32>, vector<8x64xf32>, vector<8x64xf32> -> vector<8x512xf32>
    %c0_48 = arith.constant 0 : index
    %c0_49 = arith.constant 0 : index
    %254 = vector.load %arg11[%c0_48, %c0_49] : memref<8x512xf32, #tpu.memory_space<vmem>>, vector<8x512xf32>
    tpu.vector_store %arg11[%c0_48, %c0_49], %253 {strides = array<i32>} : memref<8x512xf32, #tpu.memory_space<vmem>>, vector<8x512xf32>,
    %255 = tpu.concatenate %231, %234, %237, %240, %243, %246, %249, %252 in 0 : vector<8x64xf32>, vector<8x64xf32>, vector<8x64xf32>, vector<8x64xf32>, vector<8x64xf32>, vector<8x64xf32>, vector<8x64xf32>, vector<8x64xf32> -> vector<64x64xf32>
    %c0_50 = arith.constant 0 : index
    %c0_51 = arith.constant 0 : index
    %256 = vector.load %arg4[%c0_50, %c0_51] : memref<64x32xf32, #tpu.memory_space<vmem>>, vector<64x32xf32>
    %cst_52 = arith.constant dense<0.000000e+00> : vector<64x32xf32>
    %257 = tpu.matmul %255, %256, %cst_52 {dimension_numbers = #tpu.dot_dimension_numbers<[1], [0], [0], [1], [0, 0, 1, 1], [], []>} : vector<64x64xf32>, vector<64x32xf32>, vector<64x32xf32> -> vector<64x32xf32>
    %c0_53 = arith.constant 0 : index
    %c0_54 = arith.constant 0 : index
    %258 = vector.load %arg5[%c0_53, %c0_54] : memref<1x32xf32, #tpu.memory_space<vmem>>, vector<1x32xf32>
    %259 = vector.broadcast %258 : vector<1x32xf32> to vector<64x32xf32>
    %260 = arith.addf %257, %259 : vector<64x32xf32>
    %261 = math.tanh %260 : vector<64x32xf32>
    %c0_55 = arith.constant 0 : index
    %c0_56 = arith.constant 0 : index
    %262 = vector.load %arg6[%c0_55, %c0_56] : memref<1x32xf32, #tpu.memory_space<vmem>>, vector<1x32xf32>
    %263 = vector.broadcast %262 : vector<1x32xf32> to vector<64x32xf32>
    %264 = arith.mulf %261, %263 : vector<64x32xf32>
    %cst_57 = arith.constant dense<0.000000e+00> : vector<64xf32>
    %265 = vector.multi_reduction <add>, %264, %cst_57 [1] : vector<64x32xf32> to vector<64xf32>
    %266 = vector.shape_cast %265 : vector<64xf32> to vector<64x1xf32>
    %267 = vector.extract_strided_slice %266 {offsets = [0, 0], sizes = [8, 1], strides = [1, 1]} : vector<64x1xf32> to vector<8x1xf32>
    %268 = vector.extract_strided_slice %266 {offsets = [8, 0], sizes = [8, 1], strides = [1, 1]} : vector<64x1xf32> to vector<8x1xf32>
    %269 = vector.extract_strided_slice %266 {offsets = [16, 0], sizes = [8, 1], strides = [1, 1]} : vector<64x1xf32> to vector<8x1xf32>
    %270 = vector.extract_strided_slice %266 {offsets = [24, 0], sizes = [8, 1], strides = [1, 1]} : vector<64x1xf32> to vector<8x1xf32>
    %271 = vector.extract_strided_slice %266 {offsets = [32, 0], sizes = [8, 1], strides = [1, 1]} : vector<64x1xf32> to vector<8x1xf32>
    %272 = vector.extract_strided_slice %266 {offsets = [40, 0], sizes = [8, 1], strides = [1, 1]} : vector<64x1xf32> to vector<8x1xf32>
    %273 = vector.extract_strided_slice %266 {offsets = [48, 0], sizes = [8, 1], strides = [1, 1]} : vector<64x1xf32> to vector<8x1xf32>
    %274 = vector.extract_strided_slice %266 {offsets = [56, 0], sizes = [8, 1], strides = [1, 1]} : vector<64x1xf32> to vector<8x1xf32>
    %275 = arith.maximumf %267, %268 : vector<8x1xf32>
    %276 = arith.maximumf %275, %269 : vector<8x1xf32>
    %277 = arith.maximumf %276, %270 : vector<8x1xf32>
    %278 = arith.maximumf %277, %271 : vector<8x1xf32>
    %279 = arith.maximumf %278, %272 : vector<8x1xf32>
    %280 = arith.maximumf %279, %273 : vector<8x1xf32>
    %281 = arith.maximumf %280, %274 : vector<8x1xf32>
    %282 = arith.subf %267, %281 : vector<8x1xf32>
    %283 = math.exp %282 : vector<8x1xf32>
    %284 = arith.subf %268, %281 : vector<8x1xf32>
    %285 = math.exp %284 : vector<8x1xf32>
    %286 = arith.subf %269, %281 : vector<8x1xf32>
    %287 = math.exp %286 : vector<8x1xf32>
    %288 = arith.subf %270, %281 : vector<8x1xf32>
    %289 = math.exp %288 : vector<8x1xf32>
    %290 = arith.subf %271, %281 : vector<8x1xf32>
    %291 = math.exp %290 : vector<8x1xf32>
    %292 = arith.subf %272, %281 : vector<8x1xf32>
    %293 = math.exp %292 : vector<8x1xf32>
    %294 = arith.subf %273, %281 : vector<8x1xf32>
    %295 = math.exp %294 : vector<8x1xf32>
    %296 = arith.subf %274, %281 : vector<8x1xf32>
    %297 = math.exp %296 : vector<8x1xf32>
    %298 = arith.addf %283, %285 : vector<8x1xf32>
    %299 = arith.addf %298, %287 : vector<8x1xf32>
    %300 = arith.addf %299, %289 : vector<8x1xf32>
    %301 = arith.addf %300, %291 : vector<8x1xf32>
    %302 = arith.addf %301, %293 : vector<8x1xf32>
    %303 = arith.addf %302, %295 : vector<8x1xf32>
    %304 = arith.addf %303, %297 : vector<8x1xf32>
    %305 = tpu.reciprocal %304 {approx = true} : vector<8x1xf32> -> vector<8x1xf32>
    %306 = vector.broadcast %283 : vector<8x1xf32> to vector<8x64xf32>
    %307 = arith.mulf %306, %231 : vector<8x64xf32>
    %308 = vector.broadcast %285 : vector<8x1xf32> to vector<8x64xf32>
    %309 = arith.mulf %308, %234 : vector<8x64xf32>
    %310 = arith.addf %307, %309 : vector<8x64xf32>
    %311 = vector.broadcast %287 : vector<8x1xf32> to vector<8x64xf32>
    %312 = arith.mulf %311, %237 : vector<8x64xf32>
    %313 = arith.addf %310, %312 : vector<8x64xf32>
    %314 = vector.broadcast %289 : vector<8x1xf32> to vector<8x64xf32>
    %315 = arith.mulf %314, %240 : vector<8x64xf32>
    %316 = arith.addf %313, %315 : vector<8x64xf32>
    %317 = vector.broadcast %291 : vector<8x1xf32> to vector<8x64xf32>
    %318 = arith.mulf %317, %243 : vector<8x64xf32>
    %319 = arith.addf %316, %318 : vector<8x64xf32>
    %320 = vector.broadcast %293 : vector<8x1xf32> to vector<8x64xf32>
    %321 = arith.mulf %320, %246 : vector<8x64xf32>
    %322 = arith.addf %319, %321 : vector<8x64xf32>
    %323 = vector.broadcast %295 : vector<8x1xf32> to vector<8x64xf32>
    %324 = arith.mulf %323, %249 : vector<8x64xf32>
    %325 = arith.addf %322, %324 : vector<8x64xf32>
    %326 = vector.broadcast %297 : vector<8x1xf32> to vector<8x64xf32>
    %327 = arith.mulf %326, %252 : vector<8x64xf32>
    %328 = arith.addf %325, %327 : vector<8x64xf32>
    %329 = vector.broadcast %305 : vector<8x1xf32> to vector<8x64xf32>
    %330 = arith.mulf %328, %329 : vector<8x64xf32>
    %c0_58 = arith.constant 0 : index
    %c0_59 = arith.constant 0 : index
    %331 = vector.load %arg10[%c0_58, %c0_59] : memref<8x64xf32, #tpu.memory_space<vmem>>, vector<8x64xf32>
    tpu.vector_store %arg10[%c0_58, %c0_59], %330 {strides = array<i32>} : memref<8x64xf32, #tpu.memory_space<vmem>>, vector<8x64xf32>,
    %c0_60 = arith.constant 0 : index
    %c0_61 = arith.constant 0 : index
    %332 = vector.load %arg7[%c0_60, %c0_61] : memref<64x3xf32, #tpu.memory_space<vmem>>, vector<64x3xf32>
    %cst_62 = arith.constant dense<0.000000e+00> : vector<8x3xf32>
    %333 = tpu.matmul %330, %332, %cst_62 {dimension_numbers = #tpu.dot_dimension_numbers<[1], [0], [0], [1], [0, 0, 1, 1], [], []>} : vector<8x64xf32>, vector<64x3xf32>, vector<8x3xf32> -> vector<8x3xf32>
    %c0_63 = arith.constant 0 : index
    %c0_64 = arith.constant 0 : index
    %334 = vector.load %arg8[%c0_63, %c0_64] : memref<1x3xf32, #tpu.memory_space<vmem>>, vector<1x3xf32>
    %335 = vector.broadcast %334 : vector<1x3xf32> to vector<8x3xf32>
    %336 = arith.addf %333, %335 : vector<8x3xf32>
    %c0_65 = arith.constant 0 : index
    %c0_66 = arith.constant 0 : index
    %337 = vector.load %arg9[%c0_65, %c0_66] : memref<8x3xf32, #tpu.memory_space<vmem>>, vector<8x3xf32>
    tpu.vector_store %arg9[%c0_65, %c0_66], %336 {strides = array<i32>} : memref<8x3xf32, #tpu.memory_space<vmem>>, vector<8x3xf32>,
    return
  }
}

</mosaic_0001>

<llo_original>
// kernel: jw_attention_forward.1
$region0: #{jw_attention_forward.1}
  #allocation0 [shape = 'u32[]', space=smem, size = 0x4, offset = 0x4, fixed_abs, tag = 'smem constant byte address 0x4 - core index']
  #allocation1 [shape = 'u32[144,128]{1,0:T(1,128)}', space=vmem, size = 0x12000, scoped, tag = 'internal scratch']
  #allocation2 [shape = 'f32[64,256]{1,0:T(8,128)}', space=vmem, size = 0x10000, scoped, tag = 'scratch operand']
  %s0 = inlined_call_operand.vmem [shape: bf16[64,64], index: 0, kind: input, shape index: {}]
  %s1 = inlined_call_operand.vmem [shape: bf16[64,256], index: 1, kind: input, shape index: {}]
  %s2 = inlined_call_operand.vmem [shape: f32[1,256], index: 2, kind: input, shape index: {}]
  %s3 = inlined_call_operand.vmem [shape: bf16[64,256], index: 3, kind: input, shape index: {}]
  %s4 = inlined_call_operand.vmem [shape: f32[64,32], index: 4, kind: input, shape index: {}]
  %s5 = inlined_call_operand.vmem [shape: f32[1,32], index: 5, kind: input, shape index: {}]
  %s6 = inlined_call_operand.vmem [shape: f32[1,32], index: 6, kind: input, shape index: {}]
  %s7 = inlined_call_operand.vmem [shape: f32[64,3], index: 7, kind: input, shape index: {}]
  %s8 = inlined_call_operand.vmem [shape: f32[1,3], index: 8, kind: input, shape index: {}]
  %s9 = inlined_call_operand.vmem [shape: f32[8,3], index: 9, kind: output, shape index: {0}]
  %s10 = inlined_call_operand.vmem [shape: f32[8,64], index: 10, kind: output, shape index: {1}]
  %s11 = inlined_call_operand.vmem [shape: f32[8,512], index: 11, kind: output, shape index: {2}]
  %12 = xla_tuple %s9, %s10, %s11
  %s13 = sld [smem:[#allocation0]]
  $region62: #{jw_attention_forward.1} parent=0
    _
  %s15 = ssub.s32 1, %s13
  %s16 = scalar_select 0, %s15, %s13
  // Predicated region
  $region2: #{jw_attention_forward.1} parent=0 // pred_check
    _
  $region3: #{jw_attention_forward.1} parent=0 // pred_check_branch
    %18 = sbr.rel (0) target = $region5
  $region4: #{jw_attention_forward.1} parent=0 // pred_region
    _
  $region5: #{jw_attention_forward.1} parent=0 // pred_fallthru
    _
  // Predicated region
  $region6: #{jw_attention_forward.1} parent=0 // pred_check
    _
  $region7: #{jw_attention_forward.1} parent=0 // pred_check_branch
    %20 = sbr.rel (0) target = $region9
  $region8: #{jw_attention_forward.1} parent=0 // pred_region
    _
  $region9: #{jw_attention_forward.1} parent=0 // pred_fallthru
    _
  // Predicated region
  $region10: #{jw_attention_forward.1} parent=0 // pred_check
    _
  $region11: #{jw_attention_forward.1} parent=0 // pred_check_branch
    %22 = sbr.rel (0) target = $region13
  $region12: #{jw_attention_forward.1} parent=0 // pred_region
    _
  $region13: #{jw_attention_forward.1} parent=0 // pred_fallthru
    _
  // Predicated region
  $region14: #{jw_attention_forward.1} parent=0 // pred_check
    _
  $region15: #{jw_attention_forward.1} parent=0 // pred_check_branch
    %24 = sbr.rel (0) target = $region17
  $region16: #{jw_attention_forward.1} parent=0 // pred_region
    _
  $region17: #{jw_attention_forward.1} parent=0 // pred_fallthru
    _
  // Predicated region
  $region18: #{jw_attention_forward.1} parent=0 // pred_check
    _
  $region19: #{jw_attention_forward.1} parent=0 // pred_check_branch
    %26 = sbr.rel (0) target = $region21
  $region20: #{jw_attention_forward.1} parent=0 // pred_region
    _
  $region21: #{jw_attention_forward.1} parent=0 // pred_fallthru
    _
  // Predicated region
  $region22: #{jw_attention_forward.1} parent=0 // pred_check
    _
  $region23: #{jw_attention_forward.1} parent=0 // pred_check_branch
    %28 = sbr.rel (0) target = $region25
  $region24: #{jw_attention_forward.1} parent=0 // pred_region
    _
  $region25: #{jw_attention_forward.1} parent=0 // pred_fallthru
    _
  // Predicated region
  $region26: #{jw_attention_forward.1} parent=0 // pred_check
    _
  $region27: #{jw_attention_forward.1} parent=0 // pred_check_branch
    %30 = sbr.rel (0) target = $region29
  $region28: #{jw_attention_forward.1} parent=0 // pred_region
    _
  $region29: #{jw_attention_forward.1} parent=0 // pred_fallthru
    _
  // Predicated region
  $region30: #{jw_attention_forward.1} parent=0 // pred_check
    _
  $region31: #{jw_attention_forward.1} parent=0 // pred_check_branch
    %32 = sbr.rel (0) target = $region33
  $region32: #{jw_attention_forward.1} parent=0 // pred_region
    _
  $region33: #{jw_attention_forward.1} parent=0 // pred_fallthru
    _
  // Predicated region
  $region34: #{jw_attention_forward.1} parent=0 // pred_check
    _
  $region35: #{jw_attention_forward.1} parent=0 // pred_check_branch
    %34 = sbr.rel (0) target = $region37
  $region36: #{jw_attention_forward.1} parent=0 // pred_region
    _
  $region37: #{jw_attention_forward.1} parent=0 // pred_fallthru
    _
  %v36 = vld [vmem:[%s0] sm:$0xf]
  %v37 = vld [vmem:[%s0 + $0x4] sm:$0xf]
  %v38 = vld [vmem:[%s0 + $0x8] sm:$0xf]
  %v39 = vld [vmem:[%s0 + $0xc] sm:$0xf]
  %v40 = vld [vmem:[%s0 + $0x10] sm:$0xf]
  %v41 = vld [vmem:[%s0 + $0x14] sm:$0xf]
  %v42 = vld [vmem:[%s0 + $0x18] sm:$0xf]
  %v43 = vld [vmem:[%s0 + $0x1c] sm:$0xf]
  %v44 = vld [vmem:[%s1] sm:$0xff]
  %v45 = vld [vmem:[%s1 + $0x8] sm:$0xff]
  %v46 = vld [vmem:[%s1 + $0x10] sm:$0xff]
  %v47 = vld [vmem:[%s1 + $0x18] sm:$0xff]
  %v48 = vld [vmem:[%s1 + $0x20] sm:$0xff]
  %v49 = vld [vmem:[%s1 + $0x28] sm:$0xff]
  %v50 = vld [vmem:[%s1 + $0x30] sm:$0xff]
  %v51 = vld [vmem:[%s1 + $0x38] sm:$0xff]
  %v52 = vld [vmem:[%s2] sm:$0x3]
  %v54 = vlaneseq
  %v55 = vshrl.u32 %v54, 7
  %v56 = vsub.s32 0, %v55
  %v57 = vrot.slane %v52, %v56
  %v58 = vlaneseq
  %v59 = vshrl.u32 %v58, 7
  %v60 = vsub.s32 1, %v59
  %v61 = vrot.slane %v52, %v60
  %v72 = vunpack.c.l.b16 %v36
  %v73 = vunpack.c.l.b16 %v37
  %v74 = vunpack.c.l.b16 %v38
  %v75 = vunpack.c.l.b16 %v39
  %v76 = vunpack.c.l.b16 %v40
  %v77 = vunpack.c.l.b16 %v41
  %v78 = vunpack.c.l.b16 %v42
  %v79 = vunpack.c.l.b16 %v43
  %v80 = vpack.c.b16 %v73, %v72
  %v81 = vpack.c.b16 %v75, %v74
  %v82 = vpack.c.b16 %v77, %v76
  %v83 = vpack.c.b16 %v79, %v78
  %v92 = vunpack.c.l.b16 %v44
  %v93 = vunpack.c.h.b16 %v44
  %v94 = vunpack.c.l.b16 %v45
  %v95 = vunpack.c.h.b16 %v45
  %v96 = vunpack.c.l.b16 %v46
  %v97 = vunpack.c.h.b16 %v46
  %v98 = vunpack.c.l.b16 %v47
  %v99 = vunpack.c.h.b16 %v47
  %v100 = vunpack.c.l.b16 %v48
  %v101 = vunpack.c.h.b16 %v48
  %v102 = vunpack.c.l.b16 %v49
  %v103 = vunpack.c.h.b16 %v49
  %v104 = vunpack.c.l.b16 %v50
  %v105 = vunpack.c.h.b16 %v50
  %v106 = vunpack.c.l.b16 %v51
  %v107 = vunpack.c.h.b16 %v51
  %v108 = vpack.c.b16 %v94, %v92
  %v109 = vpack.c.b16 %v95, %v93
  %v110 = vpack.c.b16 %v98, %v96
  %v111 = vpack.c.b16 %v99, %v97
  %v112 = vpack.c.b16 %v102, %v100
  %v113 = vpack.c.b16 %v103, %v101
  %v114 = vpack.c.b16 %v106, %v104
  %v115 = vpack.c.b16 %v107, %v105
  %vm124 = vcmask 523264
  %v126 = vsel %vm124, %v80, 0
  %v129 = vsel %vm124, %v81, 0
  %v132 = vsel %vm124, %v82, 0
  %v135 = vsel %vm124, %v83, 0
  %137 = vmatprep.subr.bf16.mxu0 %v109
  %138 = vmatpush1.bf16.msra.mxu0 %v108
  %139 = vmatprep.subr.bf16.mxu0 %v111
  %140 = vmatpush1.bf16.msra.mxu0 %v110
  %141 = vmatprep.subr.bf16.mxu0 %v113
  %142 = vmatpush1.bf16.msra.mxu0 %v112
  %143 = vmatprep.subr.bf16.mxu0 %v115
  %144 = vmatpush1.bf16.msra.mxu0 %v114
  %145 = vmatprep.subr.bf16.mxu0 0
  %146 = vmatpush1.bf16.msra.mxu0 0
  %147 = vmatprep.subr.bf16.mxu0 0
  %148 = vmatpush1.bf16.msra.mxu0 0
  %149 = vmatprep.subr.bf16.mxu0 0
  %150 = vmatpush1.bf16.msra.mxu0 0
  %151 = vmatprep.subr.bf16.mxu0 0
  %152 = vmatpush1.bf16.msra.mxu0 0
  %153 = vmatprep.subr.bf16.mxu0 0
  %154 = vmatpush1.bf16.msra.mxu0 0
  %155 = vmatprep.subr.bf16.mxu0 0
  %156 = vmatpush1.bf16.msra.mxu0 0
  %157 = vmatprep.subr.bf16.mxu0 0
  %158 = vmatpush1.bf16.msra.mxu0 0
  %159 = vmatprep.subr.bf16.mxu0 0
  %160 = vmatpush1.bf16.msra.mxu0 0
  %161 = vmatprep.subr.bf16.mxu0 0
  %162 = vmatpush1.bf16.msra.mxu0 0
  %163 = vmatprep.subr.bf16.mxu0 0
  %164 = vmatpush1.bf16.msra.mxu0 0
  %165 = vmatprep.subr.bf16.mxu0 0
  %166 = vmatpush1.bf16.msra.mxu0 0
  %167 = vmatprep.subr.bf16.mxu0 0
  %168 = vmatpush1.bf16.msra.mxu0 0
  %169 = vmatprep.mubr.bf16.mxu0 0
  %170 = vmatmul.mubr.bf16.gmra.mrb[0].mxu0 %v126
  %v171 = vpop.f32.mrb[0].mxu0
  %v172 = vadd.f32 %v57, %v171
  %v173 = vpop.f32.mrb[0].mxu0
  %v174 = vadd.f32 %v61, %v173
  %v175 = vpop.f32.mrb[0].mxu0
  %v176 = vadd.f32 %v57, %v175
  %v177 = vpop.f32.mrb[0].mxu0
  %v178 = vadd.f32 %v61, %v177
  %179 = vmatprep.mubr.bf16.mxu0 0
  %180 = vmatmul.mubr.bf16.gmra.mrb[0].mxu0 %v129
  %v181 = vpop.f32.mrb[0].mxu0
  %v182 = vadd.f32 %v57, %v181
  %v183 = vpop.f32.mrb[0].mxu0
  %v184 = vadd.f32 %v61, %v183
  %v185 = vpop.f32.mrb[0].mxu0
  %v186 = vadd.f32 %v57, %v185
  %v187 = vpop.f32.mrb[0].mxu0
  %v188 = vadd.f32 %v61, %v187
  %189 = vmatprep.mubr.bf16.mxu0 0
  %190 = vmatmul.mubr.bf16.gmra.mrb[0].mxu0 %v132
  %v191 = vpop.f32.mrb[0].mxu0
  %v192 = vadd.f32 %v57, %v191
  %v193 = vpop.f32.mrb[0].mxu0
  %v194 = vadd.f32 %v61, %v193
  %v195 = vpop.f32.mrb[0].mxu0
  %v196 = vadd.f32 %v57, %v195
  %v197 = vpop.f32.mrb[0].mxu0
  %v198 = vadd.f32 %v61, %v197
  %199 = vmatprep.mubr.bf16.mxu0 0
  %200 = vmatmul.mubr.bf16.gmra.mrb[0].mxu0 %v135
  %v201 = vpop.f32.mrb[0].mxu0
  %v202 = vadd.f32 %v57, %v201
  %v203 = vpop.f32.mrb[0].mxu0
  %v204 = vadd.f32 %v61, %v203
  %v205 = vpop.f32.mrb[0].mxu0
  %v206 = vadd.f32 %v57, %v205
  %v207 = vpop.f32.mrb[0].mxu0
  %v208 = vadd.f32 %v61, %v207
  %209 = vdwg.mxu0
  %210 = vst [vmem:[#allocation2] sm:$0xff] %v172
  %211 = vst [vmem:[#allocation2 + $0x8] sm:$0xff] %v174
  %212 = vst [vmem:[#allocation2 + $0x10] sm:$0xff] %v176
  %213 = vst [vmem:[#allocation2 + $0x18] sm:$0xff] %v178
  %214 = vst [vmem:[#allocation2 + $0x20] sm:$0xff] %v182
  %215 = vst [vmem:[#allocation2 + $0x28] sm:$0xff] %v184
  %216 = vst [vmem:[#allocation2 + $0x30] sm:$0xff] %v186
  %217 = vst [vmem:[#allocation2 + $0x38] sm:$0xff] %v188
  %218 = vst [vmem:[#allocation2 + $0x40] sm:$0xff] %v192
  %219 = vst [vmem:[#allocation2 + $0x48] sm:$0xff] %v194
  %220 = vst [vmem:[#allocation2 + $0x50] sm:$0xff] %v196
  %221 = vst [vmem:[#allocation2 + $0x58] sm:$0xff] %v198
  %222 = vst [vmem:[#allocation2 + $0x60] sm:$0xff] %v202
  %223 = vst [vmem:[#allocation2 + $0x68] sm:$0xff] %v204
  %224 = vst [vmem:[#allocation2 + $0x70] sm:$0xff] %v206
  %225 = vst [vmem:[#allocation2 + $0x78] sm:$0xff] %v208
  %v226 = vld [vmem:[%s3] sm:$0xff]
  %v227 = vld [vmem:[%s3 + $0x8] sm:$0xff]
  %v228 = vld [vmem:[%s3 + $0x10] sm:$0xff]
  %v229 = vld [vmem:[%s3 + $0x18] sm:$0xff]
  %v230 = vld [vmem:[%s3 + $0x20] sm:$0xff]
  %v231 = vld [vmem:[%s3 + $0x28] sm:$0xff]
  %v232 = vld [vmem:[%s3 + $0x30] sm:$0xff]
  %v233 = vld [vmem:[%s3 + $0x38] sm:$0xff]
  %v234 = vld [vmem:[#allocation2] sm:$0xff]
  %v235 = vld [vmem:[#allocation2 + $0x8] sm:$0xff]
  %v236 = vxor.u32 %v234, 2147483648
  %v237 = vmul.f32 %v236, 1.442695
  %v238 = vpow.pop %v237
  %v239 = vadd.f32 %v238, 1.0
  %v240 = vrcp.pop %v239
  %v241 = vmul.f32 1.0, %v240
  %v242 = vtanh.pop %v235
  %v243 = vxor.u32 %v235, 2147483648
  %v244 = vmul.f32 %v243, 1.442695
  %v245 = vpow.pop %v244
  %v246 = vadd.f32 %v245, 1.0
  %v247 = vrcp.pop %v246
  %v248 = vmul.f32 1.0, %v247
  %v249 = vmul.f32 %v241, %v242
  %v250 = vtanh.pop %v249
  %252 = vrot.lane.b32.xlu0 %v250, 64
  %v253 = vpop.permute.xlu0 %252
  %v255 = vmul.f32 %v248, %v253
  %v256 = vpack.c.bf16 %v255, %v255
  %258 = vrot.lane.b32.xlu0 %v256, 64
  %v259 = vpop.permute.xlu0 %258
  %v268 = vunpack.c.l.b16 %v226
  %v269 = vunpack.c.h.b16 %v226
  %v270 = vunpack.c.l.b16 %v227
  %v271 = vunpack.c.h.b16 %v227
  %v272 = vunpack.c.l.b16 %v228
  %v273 = vunpack.c.h.b16 %v228
  %v274 = vunpack.c.l.b16 %v229
  %v275 = vunpack.c.h.b16 %v229
  %v276 = vunpack.c.l.b16 %v230
  %v277 = vunpack.c.h.b16 %v230
  %v278 = vunpack.c.l.b16 %v231
  %v279 = vunpack.c.h.b16 %v231
  %v280 = vunpack.c.l.b16 %v232
  %v281 = vunpack.c.h.b16 %v232
  %v282 = vunpack.c.l.b16 %v233
  %v283 = vunpack.c.h.b16 %v233
  %v284 = vpack.c.b16 %v270, %v268
  %v285 = vpack.c.b16 %v271, %v269
  %v286 = vpack.c.b16 %v274, %v272
  %v287 = vpack.c.b16 %v275, %v273
  %v288 = vpack.c.b16 %v278, %v276
  %v289 = vpack.c.b16 %v279, %v277
  %v290 = vpack.c.b16 %v282, %v280
  %v291 = vpack.c.b16 %v283, %v281
  %v301 = vsel %vm124, %v259, 0
  %303 = vmatprep.subr.bf16.mxu0 %v285
  %304 = vmatpush1.bf16.msra.mxu0 %v284
  %305 = vmatprep.subr.bf16.mxu0 %v287
  %306 = vmatpush1.bf16.msra.mxu0 %v286
  %307 = vmatprep.subr.bf16.mxu0 %v289
  %308 = vmatpush1.bf16.msra.mxu0 %v288
  %309 = vmatprep.subr.bf16.mxu0 %v291
  %310 = vmatpush1.bf16.msra.mxu0 %v290
  %311 = vmatprep.subr.bf16.mxu0 0
  %312 = vmatpush1.bf16.msra.mxu0 0
  %313 = vmatprep.subr.bf16.mxu0 0
  %314 = vmatpush1.bf16.msra.mxu0 0
  %315 = vmatprep.subr.bf16.mxu0 0
  %316 = vmatpush1.bf16.msra.mxu0 0
  %317 = vmatprep.subr.bf16.mxu0 0
  %318 = vmatpush1.bf16.msra.mxu0 0
  %319 = vmatprep.subr.bf16.mxu0 0
  %320 = vmatpush1.bf16.msra.mxu0 0
  %321 = vmatprep.subr.bf16.mxu0 0
  %322 = vmatpush1.bf16.msra.mxu0 0
  %323 = vmatprep.subr.bf16.mxu0 0
  %324 = vmatpush1.bf16.msra.mxu0 0
  %325 = vmatprep.subr.bf16.mxu0 0
  %326 = vmatpush1.bf16.msra.mxu0 0
  %327 = vmatprep.subr.bf16.mxu0 0
  %328 = vmatpush1.bf16.msra.mxu0 0
  %329 = vmatprep.subr.bf16.mxu0 0
  %330 = vmatpush1.bf16.msra.mxu0 0
  %331 = vmatprep.subr.bf16.mxu0 0
  %332 = vmatpush1.bf16.msra.mxu0 0
  %333 = vmatprep.subr.bf16.mxu0 0
  %334 = vmatpush1.bf16.msra.mxu0 0
  %335 = vmatprep.mubr.bf16.mxu0 0
  %336 = vmatmul.mubr.bf16.gmra.mrb[0].mxu0 %v301
  %v337 = vpop.f32.mrb[0].mxu0
  %v338 = vadd.f32 0.0, %v337
  %v339 = vpop.f32.mrb[0].mxu0
  %v340 = vadd.f32 0.0, %v339
  %v341 = vpop.f32.mrb[0].mxu0
  %v342 = vpop.f32.mrb[0].mxu0
  %343 = vdwg.mxu0
  %v344 = vld [vmem:[#allocation2 + $0x10] sm:$0xff]
  %v345 = vld [vmem:[#allocation2 + $0x18] sm:$0xff]
  %v346 = vadd.f32 %v344, %v338
  %v347 = vadd.f32 %v345, %v340
  %v348 = vxor.u32 %v346, 2147483648
  %v349 = vmul.f32 %v348, 1.442695
  %v350 = vpow.pop %v349
  %v351 = vadd.f32 %v350, 1.0
  %v352 = vrcp.pop %v351
  %v353 = vmul.f32 1.0, %v352
  %v354 = vtanh.pop %v347
  %v355 = vxor.u32 %v347, 2147483648
  %v356 = vmul.f32 %v355, 1.442695
  %v357 = vpow.pop %v356
  %v358 = vadd.f32 %v357, 1.0
  %v359 = vrcp.pop %v358
  %v360 = vmul.f32 1.0, %v359
  %362 = vrot.lane.b32.xlu0 %v249, 64
  %v363 = vpop.permute.xlu0 %362
  %v365 = vmul.f32 %v353, %v363
  %v366 = vmul.f32 %v353, %v354
  %368 = vrot.lane.b32.xlu0 %v366, 64
  %v369 = vpop.permute.xlu0 %368
  %v371 = vadd.f32 %v365, %v369
  %v372 = vtanh.pop %v371
  %v373 = vmul.f32 %v360, %v372
  %v374 = vpack.c.bf16 %v373, %v373
  %376 = vrot.lane.b32.xlu0 %v374, 64
  %v377 = vpop.permute.xlu0 %376
  %v379 = vsel %vm124, %v377, 0
  %381 = vmatprep.subr.bf16.mxu0 %v285
  %382 = vmatpush1.bf16.msra.mxu0 %v284
  %383 = vmatprep.subr.bf16.mxu0 %v287
  %384 = vmatpush1.bf16.msra.mxu0 %v286
  %385 = vmatprep.subr.bf16.mxu0 %v289
  %386 = vmatpush1.bf16.msra.mxu0 %v288
  %387 = vmatprep.subr.bf16.mxu0 %v291
  %388 = vmatpush1.bf16.msra.mxu0 %v290
  %389 = vmatprep.subr.bf16.mxu0 0
  %390 = vmatpush1.bf16.msra.mxu0 0
  %391 = vmatprep.subr.bf16.mxu0 0
  %392 = vmatpush1.bf16.msra.mxu0 0
  %393 = vmatprep.subr.bf16.mxu0 0
  %394 = vmatpush1.bf16.msra.mxu0 0
  %395 = vmatprep.subr.bf16.mxu0 0
  %396 = vmatpush1.bf16.msra.mxu0 0
  %397 = vmatprep.subr.bf16.mxu0 0
  %398 = vmatpush1.bf16.msra.mxu0 0
  %399 = vmatprep.subr.bf16.mxu0 0
  %400 = vmatpush1.bf16.msra.mxu0 0
  %401 = vmatprep.subr.bf16.mxu0 0
  %402 = vmatpush1.bf16.msra.mxu0 0
  %403 = vmatprep.subr.bf16.mxu0 0
  %404 = vmatpush1.bf16.msra.mxu0 0
  %405 = vmatprep.subr.bf16.mxu0 0
  %406 = vmatpush1.bf16.msra.mxu0 0
  %407 = vmatprep.subr.bf16.mxu0 0
  %408 = vmatpush1.bf16.msra.mxu0 0
  %409 = vmatprep.subr.bf16.mxu0 0
  %410 = vmatpush1.bf16.msra.mxu0 0
  %411 = vmatprep.subr.bf16.mxu0 0
  %412 = vmatpush1.bf16.msra.mxu0 0
  %413 = vmatprep.mubr.bf16.mxu0 0
  %414 = vmatmul.mubr.bf16.gmra.mrb[0].mxu0 %v379
  %v415 = vpop.f32.mrb[0].mxu0
  %v416 = vadd.f32 0.0, %v415
  %v417 = vpop.f32.mrb[0].mxu0
  %v418 = vadd.f32 0.0, %v417
  %v419 = vpop.f32.mrb[0].mxu0
  %v420 = vpop.f32.mrb[0].mxu0
  %421 = vdwg.mxu0
  %v422 = vld [vmem:[#allocation2 + $0x20] sm:$0xff]
  %v423 = vld [vmem:[#allocation2 + $0x28] sm:$0xff]
  %v424 = vadd.f32 %v422, %v416
  %v425 = vadd.f32 %v423, %v418
  %v426 = vxor.u32 %v424, 2147483648
  %v427 = vmul.f32 %v426, 1.442695
  %v428 = vpow.pop %v427
  %v429 = vadd.f32 %v428, 1.0
  %v430 = vrcp.pop %v429
  %v431 = vmul.f32 1.0, %v430
  %v432 = vtanh.pop %v425
  %v433 = vxor.u32 %v425, 2147483648
  %v434 = vmul.f32 %v433, 1.442695
  %v435 = vpow.pop %v434
  %v436 = vadd.f32 %v435, 1.0
  %v437 = vrcp.pop %v436
  %v438 = vmul.f32 1.0, %v437
  %v439 = vmul.f32 %v431, %v371
  %v440 = vmul.f32 %v431, %v432
  %442 = vrot.lane.b32.xlu0 %v440, 64
  %v443 = vpop.permute.xlu0 %442
  %v445 = vadd.f32 %v439, %v443
  %v446 = vtanh.pop %v445
  %v447 = vmul.f32 %v438, %v446
  %v448 = vpack.c.bf16 %v447, %v447
  %450 = vrot.lane.b32.xlu0 %v448, 64
  %v451 = vpop.permute.xlu0 %450
  %v453 = vsel %vm124, %v451, 0
  %455 = vmatprep.subr.bf16.mxu0 %v285
  %456 = vmatpush1.bf16.msra.mxu0 %v284
  %457 = vmatprep.subr.bf16.mxu0 %v287
  %458 = vmatpush1.bf16.msra.mxu0 %v286
  %459 = vmatprep.subr.bf16.mxu0 %v289
  %460 = vmatpush1.bf16.msra.mxu0 %v288
  %461 = vmatprep.subr.bf16.mxu0 %v291
  %462 = vmatpush1.bf16.msra.mxu0 %v290
  %463 = vmatprep.subr.bf16.mxu0 0
  %464 = vmatpush1.bf16.msra.mxu0 0
  %465 = vmatprep.subr.bf16.mxu0 0
  %466 = vmatpush1.bf16.msra.mxu0 0
  %467 = vmatprep.subr.bf16.mxu0 0
  %468 = vmatpush1.bf16.msra.mxu0 0
  %469 = vmatprep.subr.bf16.mxu0 0
  %470 = vmatpush1.bf16.msra.mxu0 0
  %471 = vmatprep.subr.bf16.mxu0 0
  %472 = vmatpush1.bf16.msra.mxu0 0
  %473 = vmatprep.subr.bf16.mxu0 0
  %474 = vmatpush1.bf16.msra.mxu0 0
  %475 = vmatprep.subr.bf16.mxu0 0
  %476 = vmatpush1.bf16.msra.mxu0 0
  %477 = vmatprep.subr.bf16.mxu0 0
  %478 = vmatpush1.bf16.msra.mxu0 0
  %479 = vmatprep.subr.bf16.mxu0 0
  %480 = vmatpush1.bf16.msra.mxu0 0
  %481 = vmatprep.subr.bf16.mxu0 0
  %482 = vmatpush1.bf16.msra.mxu0 0
  %483 = vmatprep.subr.bf16.mxu0 0
  %484 = vmatpush1.bf16.msra.mxu0 0
  %485 = vmatprep.subr.bf16.mxu0 0
  %486 = vmatpush1.bf16.msra.mxu0 0
  %487 = vmatprep.mubr.bf16.mxu0 0
  %488 = vmatmul.mubr.bf16.gmra.mrb[0].mxu0 %v453
  %v489 = vpop.f32.mrb[0].mxu0
  %v490 = vadd.f32 0.0, %v489
  %v491 = vpop.f32.mrb[0].mxu0
  %v492 = vadd.f32 0.0, %v491
  %v493 = vpop.f32.mrb[0].mxu0
  %v494 = vpop.f32.mrb[0].mxu0
  %495 = vdwg.mxu0
  %v496 = vld [vmem:[#allocation2 + $0x30] sm:$0xff]
  %v497 = vld [vmem:[#allocation2 + $0x38] sm:$0xff]
  %v498 = vadd.f32 %v496, %v490
  %v499 = vadd.f32 %v497, %v492
  %v500 = vxor.u32 %v498, 2147483648
  %v501 = vmul.f32 %v500, 1.442695
  %v502 = vpow.pop %v501
  %v503 = vadd.f32 %v502, 1.0
  %v504 = vrcp.pop %v503
  %v505 = vmul.f32 1.0, %v504
  %v506 = vtanh.pop %v499
  %v507 = vxor.u32 %v499, 2147483648
  %v508 = vmul.f32 %v507, 1.442695
  %v509 = vpow.pop %v508
  %v510 = vadd.f32 %v509, 1.0
  %v511 = vrcp.pop %v510
  %v512 = vmul.f32 1.0, %v511
  %v513 = vmul.f32 %v505, %v445
  %v514 = vmul.f32 %v505, %v506
  %516 = vrot.lane.b32.xlu0 %v514, 64
  %v517 = vpop.permute.xlu0 %516
  %v519 = vadd.f32 %v513, %v517
  %v520 = vtanh.pop %v519
  %v521 = vmul.f32 %v512, %v520
  %v522 = vpack.c.bf16 %v521, %v521
  %524 = vrot.lane.b32.xlu0 %v522, 64
  %v525 = vpop.permute.xlu0 %524
  %v527 = vsel %vm124, %v525, 0
  %529 = vmatprep.subr.bf16.mxu0 %v285
  %530 = vmatpush1.bf16.msra.mxu0 %v284
  %531 = vmatprep.subr.bf16.mxu0 %v287
  %532 = vmatpush1.bf16.msra.mxu0 %v286
  %533 = vmatprep.subr.bf16.mxu0 %v289
  %534 = vmatpush1.bf16.msra.mxu0 %v288
  %535 = vmatprep.subr.bf16.mxu0 %v291
  %536 = vmatpush1.bf16.msra.mxu0 %v290
  %537 = vmatprep.subr.bf16.mxu0 0
  %538 = vmatpush1.bf16.msra.mxu0 0
  %539 = vmatprep.subr.bf16.mxu0 0
  %540 = vmatpush1.bf16.msra.mxu0 0
  %541 = vmatprep.subr.bf16.mxu0 0
  %542 = vmatpush1.bf16.msra.mxu0 0
  %543 = vmatprep.subr.bf16.mxu0 0
  %544 = vmatpush1.bf16.msra.mxu0 0
  %545 = vmatprep.subr.bf16.mxu0 0
  %546 = vmatpush1.bf16.msra.mxu0 0
  %547 = vmatprep.subr.bf16.mxu0 0
  %548 = vmatpush1.bf16.msra.mxu0 0
  %549 = vmatprep.subr.bf16.mxu0 0
  %550 = vmatpush1.bf16.msra.mxu0 0
  %551 = vmatprep.subr.bf16.mxu0 0
  %552 = vmatpush1.bf16.msra.mxu0 0
  %553 = vmatprep.subr.bf16.mxu0 0
  %554 = vmatpush1.bf16.msra.mxu0 0
  %555 = vmatprep.subr.bf16.mxu0 0
  %556 = vmatpush1.bf16.msra.mxu0 0
  %557 = vmatprep.subr.bf16.mxu0 0
  %558 = vmatpush1.bf16.msra.mxu0 0
  %559 = vmatprep.subr.bf16.mxu0 0
  %560 = vmatpush1.bf16.msra.mxu0 0
  %561 = vmatprep.mubr.bf16.mxu0 0
  %562 = vmatmul.mubr.bf16.gmra.mrb[0].mxu0 %v527
  %v563 = vpop.f32.mrb[0].mxu0
  %v564 = vadd.f32 0.0, %v563
  %v565 = vpop.f32.mrb[0].mxu0
  %v566 = vadd.f32 0.0, %v565
  %v567 = vpop.f32.mrb[0].mxu0
  %v568 = vpop.f32.mrb[0].mxu0
  %569 = vdwg.mxu0
  %v570 = vld [vmem:[#allocation2 + $0x40] sm:$0xff]
  %v571 = vld [vmem:[#allocation2 + $0x48] sm:$0xff]
  %v572 = vadd.f32 %v570, %v564
  %v573 = vadd.f32 %v571, %v566
  %v574 = vxor.u32 %v572, 2147483648
  %v575 = vmul.f32 %v574, 1.442695
  %v576 = vpow.pop %v575
  %v577 = vadd.f32 %v576, 1.0
  %v578 = vrcp.pop %v577
  %v579 = vmul.f32 1.0, %v578
  %v580 = vtanh.pop %v573
  %v581 = vxor.u32 %v573, 2147483648
  %v582 = vmul.f32 %v581, 1.442695
  %v583 = vpow.pop %v582
  %v584 = vadd.f32 %v583, 1.0
  %v585 = vrcp.pop %v584
  %v586 = vmul.f32 1.0, %v585
  %v587 = vmul.f32 %v579, %v519
  %v588 = vmul.f32 %v579, %v580
  %590 = vrot.lane.b32.xlu0 %v588, 64
  %v591 = vpop.permute.xlu0 %590
  %v593 = vadd.f32 %v587, %v591
  %v594 = vtanh.pop %v593
  %v595 = vmul.f32 %v586, %v594
  %v596 = vpack.c.bf16 %v595, %v595
  %598 = vrot.lane.b32.xlu0 %v596, 64
  %v599 = vpop.permute.xlu0 %598
  %v601 = vsel %vm124, %v599, 0
  %603 = vmatprep.subr.bf16.mxu0 %v285
  %604 = vmatpush1.bf16.msra.mxu0 %v284
  %605 = vmatprep.subr.bf16.mxu0 %v287
  %606 = vmatpush1.bf16.msra.mxu0 %v286
  %607 = vmatprep.subr.bf16.mxu0 %v289
  %608 = vmatpush1.bf16.msra.mxu0 %v288
  %609 = vmatprep.subr.bf16.mxu0 %v291
  %610 = vmatpush1.bf16.msra.mxu0 %v290
  %611 = vmatprep.subr.bf16.mxu0 0
  %612 = vmatpush1.bf16.msra.mxu0 0
  %613 = vmatprep.subr.bf16.mxu0 0
  %614 = vmatpush1.bf16.msra.mxu0 0
  %615 = vmatprep.subr.bf16.mxu0 0
  %616 = vmatpush1.bf16.msra.mxu0 0
  %617 = vmatprep.subr.bf16.mxu0 0
  %618 = vmatpush1.bf16.msra.mxu0 0
  %619 = vmatprep.subr.bf16.mxu0 0
  %620 = vmatpush1.bf16.msra.mxu0 0
  %621 = vmatprep.subr.bf16.mxu0 0
  %622 = vmatpush1.bf16.msra.mxu0 0
  %623 = vmatprep.subr.bf16.mxu0 0
  %624 = vmatpush1.bf16.msra.mxu0 0
  %625 = vmatprep.subr.bf16.mxu0 0
  %626 = vmatpush1.bf16.msra.mxu0 0
  %627 = vmatprep.subr.bf16.mxu0 0
  %628 = vmatpush1.bf16.msra.mxu0 0
  %629 = vmatprep.subr.bf16.mxu0 0
  %630 = vmatpush1.bf16.msra.mxu0 0
  %631 = vmatprep.subr.bf16.mxu0 0
  %632 = vmatpush1.bf16.msra.mxu0 0
  %633 = vmatprep.subr.bf16.mxu0 0
  %634 = vmatpush1.bf16.msra.mxu0 0
  %635 = vmatprep.mubr.bf16.mxu0 0
  %636 = vmatmul.mubr.bf16.gmra.mrb[0].mxu0 %v601
  %v637 = vpop.f32.mrb[0].mxu0
  %v638 = vadd.f32 0.0, %v637
  %v639 = vpop.f32.mrb[0].mxu0
  %v640 = vadd.f32 0.0, %v639
  %v641 = vpop.f32.mrb[0].mxu0
  %v642 = vpop.f32.mrb[0].mxu0
  %643 = vdwg.mxu0
  %v644 = vld [vmem:[#allocation2 + $0x50] sm:$0xff]
  %v645 = vld [vmem:[#allocation2 + $0x58] sm:$0xff]
  %v646 = vadd.f32 %v644, %v638
  %v647 = vadd.f32 %v645, %v640
  %v648 = vxor.u32 %v646, 2147483648
  %v649 = vmul.f32 %v648, 1.442695
  %v650 = vpow.pop %v649
  %v651 = vadd.f32 %v650, 1.0
  %v652 = vrcp.pop %v651
  %v653 = vmul.f32 1.0, %v652
  %v654 = vtanh.pop %v647
  %v655 = vxor.u32 %v647, 2147483648
  %v656 = vmul.f32 %v655, 1.442695
  %v657 = vpow.pop %v656
  %v658 = vadd.f32 %v657, 1.0
  %v659 = vrcp.pop %v658
  %v660 = vmul.f32 1.0, %v659
  %v661 = vmul.f32 %v653, %v593
  %v662 = vmul.f32 %v653, %v654
  %664 = vrot.lane.b32.xlu0 %v662, 64
  %v665 = vpop.permute.xlu0 %664
  %v667 = vadd.f32 %v661, %v665
  %v668 = vtanh.pop %v667
  %v669 = vmul.f32 %v660, %v668
  %v670 = vpack.c.bf16 %v669, %v669
  %672 = vrot.lane.b32.xlu0 %v670, 64
  %v673 = vpop.permute.xlu0 %672
  %v675 = vsel %vm124, %v673, 0
  %677 = vmatprep.subr.bf16.mxu0 %v285
  %678 = vmatpush1.bf16.msra.mxu0 %v284
  %679 = vmatprep.subr.bf16.mxu0 %v287
  %680 = vmatpush1.bf16.msra.mxu0 %v286
  %681 = vmatprep.subr.bf16.mxu0 %v289
  %682 = vmatpush1.bf16.msra.mxu0 %v288
  %683 = vmatprep.subr.bf16.mxu0 %v291
  %684 = vmatpush1.bf16.msra.mxu0 %v290
  %685 = vmatprep.subr.bf16.mxu0 0
  %686 = vmatpush1.bf16.msra.mxu0 0
  %687 = vmatprep.subr.bf16.mxu0 0
  %688 = vmatpush1.bf16.msra.mxu0 0
  %689 = vmatprep.subr.bf16.mxu0 0
  %690 = vmatpush1.bf16.msra.mxu0 0
  %691 = vmatprep.subr.bf16.mxu0 0
  %692 = vmatpush1.bf16.msra.mxu0 0
  %693 = vmatprep.subr.bf16.mxu0 0
  %694 = vmatpush1.bf16.msra.mxu0 0
  %695 = vmatprep.subr.bf16.mxu0 0
  %696 = vmatpush1.bf16.msra.mxu0 0
  %697 = vmatprep.subr.bf16.mxu0 0
  %698 = vmatpush1.bf16.msra.mxu0 0
  %699 = vmatprep.subr.bf16.mxu0 0
  %700 = vmatpush1.bf16.msra.mxu0 0
  %701 = vmatprep.subr.bf16.mxu0 0
  %702 = vmatpush1.bf16.msra.mxu0 0
  %703 = vmatprep.subr.bf16.mxu0 0
  %704 = vmatpush1.bf16.msra.mxu0 0
  %705 = vmatprep.subr.bf16.mxu0 0
  %706 = vmatpush1.bf16.msra.mxu0 0
  %707 = vmatprep.subr.bf16.mxu0 0
  %708 = vmatpush1.bf16.msra.mxu0 0
  %709 = vmatprep.mubr.bf16.mxu0 0
  %710 = vmatmul.mubr.bf16.gmra.mrb[0].mxu0 %v675
  %v711 = vpop.f32.mrb[0].mxu0
  %v712 = vadd.f32 0.0, %v711
  %v713 = vpop.f32.mrb[0].mxu0
  %v714 = vadd.f32 0.0, %v713
  %v715 = vpop.f32.mrb[0].mxu0
  %v716 = vpop.f32.mrb[0].mxu0
  %717 = vdwg.mxu0
  %v718 = vld [vmem:[#allocation2 + $0x60] sm:$0xff]
  %v719 = vld [vmem:[#allocation2 + $0x68] sm:$0xff]
  %v720 = vadd.f32 %v718, %v712
  %v721 = vadd.f32 %v719, %v714
  %v722 = vxor.u32 %v720, 2147483648
  %v723 = vmul.f32 %v722, 1.442695
  %v724 = vpow.pop %v723
  %v725 = vadd.f32 %v724, 1.0
  %v726 = vrcp.pop %v725
  %v727 = vmul.f32 1.0, %v726
  %v728 = vtanh.pop %v721
  %v729 = vxor.u32 %v721, 2147483648
  %v730 = vmul.f32 %v729, 1.442695
  %v731 = vpow.pop %v730
  %v732 = vadd.f32 %v731, 1.0
  %v733 = vrcp.pop %v732
  %v734 = vmul.f32 1.0, %v733
  %v735 = vmul.f32 %v727, %v667
  %v736 = vmul.f32 %v727, %v728
  %738 = vrot.lane.b32.xlu0 %v736, 64
  %v739 = vpop.permute.xlu0 %738
  %v741 = vadd.f32 %v735, %v739
  %v742 = vtanh.pop %v741
  %v743 = vmul.f32 %v734, %v742
  %v744 = vpack.c.bf16 %v743, %v743
  %746 = vrot.lane.b32.xlu0 %v744, 64
  %v747 = vpop.permute.xlu0 %746
  %v749 = vsel %vm124, %v747, 0
  %751 = vmatprep.subr.bf16.mxu0 %v285
  %752 = vmatpush1.bf16.msra.mxu0 %v284
  %753 = vmatprep.subr.bf16.mxu0 %v287
  %754 = vmatpush1.bf16.msra.mxu0 %v286
  %755 = vmatprep.subr.bf16.mxu0 %v289
  %756 = vmatpush1.bf16.msra.mxu0 %v288
  %757 = vmatprep.subr.bf16.mxu0 %v291
  %758 = vmatpush1.bf16.msra.mxu0 %v290
  %759 = vmatprep.subr.bf16.mxu0 0
  %760 = vmatpush1.bf16.msra.mxu0 0
  %761 = vmatprep.subr.bf16.mxu0 0
  %762 = vmatpush1.bf16.msra.mxu0 0
  %763 = vmatprep.subr.bf16.mxu0 0
  %764 = vmatpush1.bf16.msra.mxu0 0
  %765 = vmatprep.subr.bf16.mxu0 0
  %766 = vmatpush1.bf16.msra.mxu0 0
  %767 = vmatprep.subr.bf16.mxu0 0
  %768 = vmatpush1.bf16.msra.mxu0 0
  %769 = vmatprep.subr.bf16.mxu0 0
  %770 = vmatpush1.bf16.msra.mxu0 0
  %771 = vmatprep.subr.bf16.mxu0 0
  %772 = vmatpush1.bf16.msra.mxu0 0
  %773 = vmatprep.subr.bf16.mxu0 0
  %774 = vmatpush1.bf16.msra.mxu0 0
  %775 = vmatprep.subr.bf16.mxu0 0
  %776 = vmatpush1.bf16.msra.mxu0 0
  %777 = vmatprep.subr.bf16.mxu0 0
  %778 = vmatpush1.bf16.msra.mxu0 0
  %779 = vmatprep.subr.bf16.mxu0 0
  %780 = vmatpush1.bf16.msra.mxu0 0
  %781 = vmatprep.subr.bf16.mxu0 0
  %782 = vmatpush1.bf16.msra.mxu0 0
  %783 = vmatprep.mubr.bf16.mxu0 0
  %784 = vmatmul.mubr.bf16.gmra.mrb[0].mxu0 %v749
  %v785 = vpop.f32.mrb[0].mxu0
  %v786 = vadd.f32 0.0, %v785
  %v787 = vpop.f32.mrb[0].mxu0
  %v788 = vadd.f32 0.0, %v787
  %v789 = vpop.f32.mrb[0].mxu0
  %v790 = vpop.f32.mrb[0].mxu0
  %791 = vdwg.mxu0
  %v792 = vld [vmem:[#allocation2 + $0x70] sm:$0xff]
  %v793 = vld [vmem:[#allocation2 + $0x78] sm:$0xff]
  %v794 = vadd.f32 %v792, %v786
  %v795 = vadd.f32 %v793, %v788
  %v796 = vxor.u32 %v794, 2147483648
  %v797 = vmul.f32 %v796, 1.442695
  %v798 = vpow.pop %v797
  %v799 = vadd.f32 %v798, 1.0
  %v800 = vrcp.pop %v799
  %v801 = vmul.f32 1.0, %v800
  %v802 = vtanh.pop %v795
  %v803 = vxor.u32 %v795, 2147483648
  %v804 = vmul.f32 %v803, 1.442695
  %v805 = vpow.pop %v804
  %v806 = vadd.f32 %v805, 1.0
  %v807 = vrcp.pop %v806
  %v808 = vmul.f32 1.0, %v807
  %v809 = vmul.f32 %v801, %v741
  %v810 = vmul.f32 %v801, %v802
  %812 = vrot.lane.b32.xlu0 %v810, 64
  %v813 = vpop.permute.xlu0 %812
  %v815 = vadd.f32 %v809, %v813
  %v816 = vtanh.pop %v815
  %v817 = vmul.f32 %v808, %v816
  %819 = vrot.lane.b32.xlu0 %v255, 64
  %v820 = vpop.permute.xlu0 %819
  %823 = vrot.lane.b32.xlu0 %v817, 64
  %v824 = vpop.permute.xlu0 %823
  %vm826 = vcmask 261120
  %v827 = vsel %vm826, %v820, %v824
  %829 = vrot.lane.b32.xlu0 %v373, 64
  %v830 = vpop.permute.xlu0 %829
  %833 = vrot.lane.b32.xlu0 %v743, 64
  %v834 = vpop.permute.xlu0 %833
  %v836 = vsel %vm826, %v830, %v834
  %838 = vrot.lane.b32.xlu0 %v447, 64
  %v839 = vpop.permute.xlu0 %838
  %842 = vrot.lane.b32.xlu0 %v669, 64
  %v843 = vpop.permute.xlu0 %842
  %v845 = vsel %vm826, %v839, %v843
  %847 = vrot.lane.b32.xlu0 %v521, 64
  %v848 = vpop.permute.xlu0 %847
  %851 = vrot.lane.b32.xlu0 %v595, 64
  %v852 = vpop.permute.xlu0 %851
  %v854 = vsel %vm826, %v848, %v852
  %v855 = vsel %vm826, %v852, %v848
  %v856 = vsel %vm826, %v843, %v839
  %v857 = vsel %vm826, %v834, %v830
  %v858 = vsel %vm826, %v824, %v820
  %860 = vrot.lane.b32.xlu0 %v836, 64
  %v861 = vpop.permute.xlu0 %860
  %864 = vrot.lane.b32.xlu0 %v854, 64
  %v865 = vpop.permute.xlu0 %864
  %868 = vrot.lane.b32.xlu0 %v856, 64
  %v869 = vpop.permute.xlu0 %868
  %872 = vrot.lane.b32.xlu0 %v858, 64
  %v873 = vpop.permute.xlu0 %872
  %v875 = vsel %vm124, %v827, %v861
  %v876 = vsel %vm124, %v845, %v865
  %v877 = vsel %vm124, %v855, %v869
  %v878 = vsel %vm124, %v857, %v873
  %879 = vst [vmem:[%s11] sm:$0xff] %v875
  %880 = vst [vmem:[%s11 + $0x8] sm:$0xff] %v876
  %881 = vst [vmem:[%s11 + $0x10] sm:$0xff] %v877
  %882 = vst [vmem:[%s11 + $0x18] sm:$0xff] %v878
  %v883 = vld [vmem:[%s4] sm:$0xff]
  %v884 = vld [vmem:[%s4 + $0x8] sm:$0xff]
  %v885 = vld [vmem:[%s4 + $0x10] sm:$0xff]
  %v886 = vld [vmem:[%s4 + $0x18] sm:$0xff]
  %v887 = vld [vmem:[%s4 + $0x20] sm:$0xff]
  %v888 = vld [vmem:[%s4 + $0x28] sm:$0xff]
  %v889 = vld [vmem:[%s4 + $0x30] sm:$0xff]
  %v890 = vld [vmem:[%s4 + $0x38] sm:$0xff]
  %v891 = vld [vmem:[%s5] sm:$0x1]
  %v893 = vlaneseq
  %v894 = vshrl.u32 %v893, 7
  %v895 = vsub.s32 0, %v894
  %v896 = vrot.slane %v891, %v895
  %v899 = vsel %vm124, %v827, 0
  %v901 = vsel %vm124, %v836, 0
  %v904 = vsel %vm124, %v845, 0
  %v906 = vsel %vm124, %v854, 0
  %v909 = vsel %vm124, %v855, 0
  %v911 = vsel %vm124, %v856, 0
  %v914 = vsel %vm124, %v857, 0
  %v916 = vsel %vm124, %v858, 0
  %918 = vmatprep.subr.mxu0 0.0
  %919 = vmatpush1.msra.mxu0 %v883
  %920 = vmatprep.subr.mxu0 0.0
  %921 = vmatpush1.msra.mxu0 %v884
  %922 = vmatprep.subr.mxu0 0.0
  %923 = vmatpush1.msra.mxu0 %v885
  %924 = vmatprep.subr.mxu0 0.0
  %925 = vmatpush1.msra.mxu0 %v886
  %926 = vmatprep.subr.mxu0 0.0
  %927 = vmatpush1.msra.mxu0 %v887
  %928 = vmatprep.subr.mxu0 0.0
  %929 = vmatpush1.msra.mxu0 %v888
  %930 = vmatprep.subr.mxu0 0.0
  %931 = vmatpush1.msra.mxu0 %v889
  %932 = vmatprep.subr.mxu0 0.0
  %933 = vmatpush1.msra.mxu0 %v890
  %934 = vmatprep.subr.mxu0 0.0
  %935 = vmatpush1.msra.mxu0 0.0
  %936 = vmatprep.subr.mxu0 0.0
  %937 = vmatpush1.msra.mxu0 0.0
  %938 = vmatprep.subr.mxu0 0.0
  %939 = vmatpush1.msra.mxu0 0.0
  %940 = vmatprep.subr.mxu0 0.0
  %941 = vmatpush1.msra.mxu0 0.0
  %942 = vmatprep.subr.mxu0 0.0
  %943 = vmatpush1.msra.mxu0 0.0
  %944 = vmatprep.subr.mxu0 0.0
  %945 = vmatpush1.msra.mxu0 0.0
  %946 = vmatprep.subr.mxu0 0.0
  %947 = vmatpush1.msra.mxu0 0.0
  %948 = vmatprep.subr.mxu0 0.0
  %949 = vmatpush1.msra.mxu0 0.0
  %950 = vmatprep.subr.mxu0 0.0
  %951 = vmatpush1.msra.mxu0 0.0
  %952 = vmatprep.subr.mxu0 0.0
  %953 = vmatpush1.msra.mxu0 0.0
  %954 = vmatprep.subr.mxu0 0.0
  %955 = vmatpush1.msra.mxu0 0.0
  %956 = vmatprep.subr.mxu0 0.0
  %957 = vmatpush1.msra.mxu0 0.0
  %958 = vmatprep.subr.mxu0 0.0
  %959 = vmatpush1.msra.mxu0 0.0
  %960 = vmatprep.subr.mxu0 0.0
  %961 = vmatpush1.msra.mxu0 0.0
  %962 = vmatprep.subr.mxu0 0.0
  %963 = vmatpush1.msra.mxu0 0.0
  %964 = vmatprep.subr.mxu0 0.0
  %965 = vmatpush1.msra.mxu0 0.0
  %966 = vmatprep.subr.mxu0 0.0
  %967 = vmatpush1.msra.mxu0 0.0
  %968 = vmatprep.subr.mxu0 0.0
  %969 = vmatpush1.msra.mxu0 0.0
  %970 = vmatprep.subr.mxu0 0.0
  %971 = vmatpush1.msra.mxu0 0.0
  %972 = vmatprep.subr.mxu0 0.0
  %973 = vmatpush1.msra.mxu0 0.0
  %974 = vmatprep.subr.mxu0 0.0
  %975 = vmatpush1.msra.mxu0 0.0
  %976 = vmatprep.subr.mxu0 0.0
  %977 = vmatpush1.msra.mxu0 0.0
  %978 = vmatprep.subr.mxu0 0.0
  %979 = vmatpush1.msra.mxu0 0.0
  %980 = vmatprep.subr.mxu0 0.0
  %981 = vmatpush1.msra.mxu0 0.0
  %982 = vmatprep.mubr.f32.mxu0 0.0
  %983 = vmatmul.mubr.f32.gmra.mrb[0].mxu0 %v899
  %v984 = vpop.f32.mrb[0].mxu0
  %v985 = vadd.f32 %v896, %v984
  %v986 = vpop.f32.mrb[0].mxu0
  %987 = vmatprep.mubr.f32.mxu0 0.0
  %988 = vmatmul.mubr.f32.gmra.mrb[0].mxu0 %v901
  %v989 = vpop.f32.mrb[0].mxu0
  %v990 = vadd.f32 %v896, %v989
  %v991 = vpop.f32.mrb[0].mxu0
  %992 = vmatprep.mubr.f32.mxu0 0.0
  %993 = vmatmul.mubr.f32.gmra.mrb[0].mxu0 %v904
  %v994 = vpop.f32.mrb[0].mxu0
  %v995 = vadd.f32 %v896, %v994
  %v996 = vpop.f32.mrb[0].mxu0
  %997 = vmatprep.mubr.f32.mxu0 0.0
  %998 = vmatmul.mubr.f32.gmra.mrb[0].mxu0 %v906
  %v999 = vpop.f32.mrb[0].mxu0
  %v1000 = vadd.f32 %v896, %v999
  %v1001 = vpop.f32.mrb[0].mxu0
  %1002 = vmatprep.mubr.f32.mxu0 0.0
  %1003 = vmatmul.mubr.f32.gmra.mrb[0].mxu0 %v909
  %v1004 = vpop.f32.mrb[0].mxu0
  %v1005 = vadd.f32 %v896, %v1004
  %v1006 = vpop.f32.mrb[0].mxu0
  %1007 = vmatprep.mubr.f32.mxu0 0.0
  %1008 = vmatmul.mubr.f32.gmra.mrb[0].mxu0 %v911
  %v1009 = vpop.f32.mrb[0].mxu0
  %v1010 = vadd.f32 %v896, %v1009
  %v1011 = vpop.f32.mrb[0].mxu0
  %1012 = vmatprep.mubr.f32.mxu0 0.0
  %1013 = vmatmul.mubr.f32.gmra.mrb[0].mxu0 %v914
  %v1014 = vpop.f32.mrb[0].mxu0
  %v1015 = vadd.f32 %v896, %v1014
  %v1016 = vpop.f32.mrb[0].mxu0
  %1017 = vmatprep.mubr.f32.mxu0 0.0
  %1018 = vmatmul.mubr.f32.gmra.mrb[0].mxu0 %v916
  %v1019 = vpop.f32.mrb[0].mxu0
  %v1020 = vadd.f32 %v896, %v1019
  %v1021 = vpop.f32.mrb[0].mxu0
  %1022 = vdwg.mxu0
  %v1023 = vtanh.pop %v985
  %v1024 = vtanh.pop %v990
  %v1025 = vtanh.pop %v995
  %v1026 = vtanh.pop %v1000
  %v1027 = vtanh.pop %v1005
  %v1028 = vtanh.pop %v1010
  %v1029 = vtanh.pop %v1015
  %v1030 = vtanh.pop %v1020
  %v1031 = vld [vmem:[%s6] sm:$0x1]
  %v1033 = vlaneseq
  %v1034 = vshrl.u32 %v1033, 7
  %v1035 = vsub.s32 0, %v1034
  %v1036 = vrot.slane %v1031, %v1035
  %v1038 = vmul.f32 %v1023, %v1036
  %v1039 = vmul.f32 %v1024, %v1036
  %v1040 = vmul.f32 %v1025, %v1036
  %v1041 = vmul.f32 %v1026, %v1036
  %v1042 = vmul.f32 %v1027, %v1036
  %v1043 = vmul.f32 %v1028, %v1036
  %v1044 = vmul.f32 %v1029, %v1036
  %v1045 = vmul.f32 %v1030, %v1036
  %v1046 = vsel %vm826, %v1038, 0.0
  %1047 = vadd.xlane.f32.xlu0 %v1046
  %v1048 = vpop.xlane.xlu0 %1047
  %v1049 = vsel %vm826, %v1039, 0.0
  %1050 = vadd.xlane.f32.xlu0 %v1049
  %v1051 = vpop.xlane.xlu0 %1050
  %v1052 = vsel %vm826, %v1040, 0.0
  %1053 = vadd.xlane.f32.xlu0 %v1052
  %v1054 = vpop.xlane.xlu0 %1053
  %v1055 = vsel %vm826, %v1041, 0.0
  %1056 = vadd.xlane.f32.xlu0 %v1055
  %v1057 = vpop.xlane.xlu0 %1056
  %v1058 = vsel %vm826, %v1042, 0.0
  %1059 = vadd.xlane.f32.xlu0 %v1058
  %v1060 = vpop.xlane.xlu0 %1059
  %v1061 = vsel %vm826, %v1043, 0.0
  %1062 = vadd.xlane.f32.xlu0 %v1061
  %v1063 = vpop.xlane.xlu0 %1062
  %v1064 = vsel %vm826, %v1044, 0.0
  %1065 = vadd.xlane.f32.xlu0 %v1064
  %v1066 = vpop.xlane.xlu0 %1065
  %v1067 = vsel %vm826, %v1045, 0.0
  %1068 = vadd.xlane.f32.xlu0 %v1067
  %v1069 = vpop.xlane.xlu0 %1068
  %v1070 = vmax.f32 %v1048, %v1051
  %v1071 = vmax.f32 %v1070, %v1054
  %v1072 = vmax.f32 %v1071, %v1057
  %v1073 = vmax.f32 %v1072, %v1060
  %v1074 = vmax.f32 %v1073, %v1063
  %v1075 = vmax.f32 %v1074, %v1066
  %v1076 = vmax.f32 %v1075, %v1069
  %v1077 = vsub.f32 %v1048, %v1076
  %v1078 = vmul.f32 %v1077, 1.442695
  %v1079 = vpow.pop %v1078
  %v1080 = vsub.f32 %v1051, %v1076
  %v1081 = vmul.f32 %v1080, 1.442695
  %v1082 = vpow.pop %v1081
  %v1083 = vsub.f32 %v1054, %v1076
  %v1084 = vmul.f32 %v1083, 1.442695
  %v1085 = vpow.pop %v1084
  %v1086 = vsub.f32 %v1057, %v1076
  %v1087 = vmul.f32 %v1086, 1.442695
  %v1088 = vpow.pop %v1087
  %v1089 = vsub.f32 %v1060, %v1076
  %v1090 = vmul.f32 %v1089, 1.442695
  %v1091 = vpow.pop %v1090
  %v1092 = vsub.f32 %v1063, %v1076
  %v1093 = vmul.f32 %v1092, 1.442695
  %v1094 = vpow.pop %v1093
  %v1095 = vsub.f32 %v1066, %v1076
  %v1096 = vmul.f32 %v1095, 1.442695
  %v1097 = vpow.pop %v1096
  %v1098 = vsub.f32 %v1069, %v1076
  %v1099 = vmul.f32 %v1098, 1.442695
  %v1100 = vpow.pop %v1099
  %v1101 = vadd.f32 %v1079, %v1082
  %v1102 = vadd.f32 %v1101, %v1085
  %v1103 = vadd.f32 %v1102, %v1088
  %v1104 = vadd.f32 %v1103, %v1091
  %v1105 = vadd.f32 %v1104, %v1094
  %v1106 = vadd.f32 %v1105, %v1097
  %v1107 = vadd.f32 %v1106, %v1100
  %v1108 = vrcp.pop %v1107
  %v1109 = vmul.f32 %v1079, %v827
  %v1110 = vmul.f32 %v1082, %v836
  %v1111 = vadd.f32 %v1109, %v1110
  %v1112 = vmul.f32 %v1085, %v845
  %v1113 = vadd.f32 %v1111, %v1112
  %v1114 = vmul.f32 %v1088, %v854
  %v1115 = vadd.f32 %v1113, %v1114
  %v1116 = vmul.f32 %v1091, %v855
  %v1117 = vadd.f32 %v1115, %v1116
  %v1118 = vmul.f32 %v1094, %v856
  %v1119 = vadd.f32 %v1117, %v1118
  %v1120 = vmul.f32 %v1097, %v857
  %v1121 = vadd.f32 %v1119, %v1120
  %v1122 = vmul.f32 %v1100, %v858
  %v1123 = vadd.f32 %v1121, %v1122
  %v1124 = vmul.f32 %v1123, %v1108
  %1125 = vst.msk [vmem:[%s10] sm:$0xff] %vm124, %v1124
  %v1126 = vld [vmem:[%s7] sm:$0xff]
  %v1127 = vld [vmem:[%s7 + $0x8] sm:$0xff]
  %v1128 = vld [vmem:[%s7 + $0x10] sm:$0xff]
  %v1129 = vld [vmem:[%s7 + $0x18] sm:$0xff]
  %v1130 = vld [vmem:[%s7 + $0x20] sm:$0xff]
  %v1131 = vld [vmem:[%s7 + $0x28] sm:$0xff]
  %v1132 = vld [vmem:[%s7 + $0x30] sm:$0xff]
  %v1133 = vld [vmem:[%s7 + $0x38] sm:$0xff]
  %v1134 = vld [vmem:[%s8] sm:$0x1]
  %v1136 = vlaneseq
  %v1137 = vshrl.u32 %v1136, 7
  %v1138 = vsub.s32 0, %v1137
  %v1139 = vrot.slane %v1134, %v1138
  %v1142 = vsel %vm124, %v1124, 0
  %1144 = vmatprep.subr.mxu0 0.0
  %1145 = vmatpush1.msra.mxu0 %v1126
  %1146 = vmatprep.subr.mxu0 0.0
  %1147 = vmatpush1.msra.mxu0 %v1127
  %1148 = vmatprep.subr.mxu0 0.0
  %1149 = vmatpush1.msra.mxu0 %v1128
  %1150 = vmatprep.subr.mxu0 0.0
  %1151 = vmatpush1.msra.mxu0 %v1129
  %1152 = vmatprep.subr.mxu0 0.0
  %1153 = vmatpush1.msra.mxu0 %v1130
  %1154 = vmatprep.subr.mxu0 0.0
  %1155 = vmatpush1.msra.mxu0 %v1131
  %1156 = vmatprep.subr.mxu0 0.0
  %1157 = vmatpush1.msra.mxu0 %v1132
  %1158 = vmatprep.subr.mxu0 0.0
  %1159 = vmatpush1.msra.mxu0 %v1133
  %1160 = vmatprep.subr.mxu0 0.0
  %1161 = vmatpush1.msra.mxu0 0.0
  %1162 = vmatprep.subr.mxu0 0.0
  %1163 = vmatpush1.msra.mxu0 0.0
  %1164 = vmatprep.subr.mxu0 0.0
  %1165 = vmatpush1.msra.mxu0 0.0
  %1166 = vmatprep.subr.mxu0 0.0
  %1167 = vmatpush1.msra.mxu0 0.0
  %1168 = vmatprep.subr.mxu0 0.0
  %1169 = vmatpush1.msra.mxu0 0.0
  %1170 = vmatprep.subr.mxu0 0.0
  %1171 = vmatpush1.msra.mxu0 0.0
  %1172 = vmatprep.subr.mxu0 0.0
  %1173 = vmatpush1.msra.mxu0 0.0
  %1174 = vmatprep.subr.mxu0 0.0
  %1175 = vmatpush1.msra.mxu0 0.0
  %1176 = vmatprep.subr.mxu0 0.0
  %1177 = vmatpush1.msra.mxu0 0.0
  %1178 = vmatprep.subr.mxu0 0.0
  %1179 = vmatpush1.msra.mxu0 0.0
  %1180 = vmatprep.subr.mxu0 0.0
  %1181 = vmatpush1.msra.mxu0 0.0
  %1182 = vmatprep.subr.mxu0 0.0
  %1183 = vmatpush1.msra.mxu0 0.0
  %1184 = vmatprep.subr.mxu0 0.0
  %1185 = vmatpush1.msra.mxu0 0.0
  %1186 = vmatprep.subr.mxu0 0.0
  %1187 = vmatpush1.msra.mxu0 0.0
  %1188 = vmatprep.subr.mxu0 0.0
  %1189 = vmatpush1.msra.mxu0 0.0
  %1190 = vmatprep.subr.mxu0 0.0
  %1191 = vmatpush1.msra.mxu0 0.0
  %1192 = vmatprep.subr.mxu0 0.0
  %1193 = vmatpush1.msra.mxu0 0.0
  %1194 = vmatprep.subr.mxu0 0.0
  %1195 = vmatpush1.msra.mxu0 0.0
  %1196 = vmatprep.subr.mxu0 0.0
  %1197 = vmatpush1.msra.mxu0 0.0
  %1198 = vmatprep.subr.mxu0 0.0
  %1199 = vmatpush1.msra.mxu0 0.0
  %1200 = vmatprep.subr.mxu0 0.0
  %1201 = vmatpush1.msra.mxu0 0.0
  %1202 = vmatprep.subr.mxu0 0.0
  %1203 = vmatpush1.msra.mxu0 0.0
  %1204 = vmatprep.subr.mxu0 0.0
  %1205 = vmatpush1.msra.mxu0 0.0
  %1206 = vmatprep.subr.mxu0 0.0
  %1207 = vmatpush1.msra.mxu0 0.0
  %1208 = vmatprep.mubr.f32.mxu0 0.0
  %1209 = vmatmul.mubr.f32.gmra.mrb[0].mxu0 %v1142
  %v1210 = vpop.f32.mrb[0].mxu0
  %v1211 = vadd.f32 %v1139, %v1210
  %v1212 = vpop.f32.mrb[0].mxu0
  %1213 = vdwg.mxu0
  %vm1214 = vcmask 23552
  %1215 = vst.msk [vmem:[%s9] sm:$0xff] %vm1214, %v1211
  // Predicated region
  $region38: #{jw_attention_forward.1} parent=0 // pred_check
    _
  $region39: #{jw_attention_forward.1} parent=0 // pred_check_branch
    %1217 = sbr.rel (0) target = $region41
  $region40: #{jw_attention_forward.1} parent=0 // pred_region
    _
  $region41: #{jw_attention_forward.1} parent=0 // pred_fallthru
    _
  // Predicated region
  $region42: #{jw_attention_forward.1} parent=0 // pred_check
    _
  $region43: #{jw_attention_forward.1} parent=0 // pred_check_branch
    %1219 = sbr.rel (0) target = $region45
  $region44: #{jw_attention_forward.1} parent=0 // pred_region
    _
  $region45: #{jw_attention_forward.1} parent=0 // pred_fallthru
    _
  // Predicated region
  $region46: #{jw_attention_forward.1} parent=0 // pred_check
    _
  $region47: #{jw_attention_forward.1} parent=0 // pred_check_branch
    %1221 = sbr.rel (0) target = $region49
  $region48: #{jw_attention_forward.1} parent=0 // pred_region
    _
  $region49: #{jw_attention_forward.1} parent=0 // pred_fallthru
    _
  // Predicated region
  $region50: #{jw_attention_forward.1} parent=0 // pred_check
    _
  $region51: #{jw_attention_forward.1} parent=0 // pred_check_branch
    %1223 = sbr.rel (0) target = $region53
  $region52: #{jw_attention_forward.1} parent=0 // pred_region
    _
  $region53: #{jw_attention_forward.1} parent=0 // pred_fallthru
    _
  // Predicated region
  $region54: #{jw_attention_forward.1} parent=0 // pred_check
    _
  $region55: #{jw_attention_forward.1} parent=0 // pred_check_branch
    %1225 = sbr.rel (0) target = $region57
  $region56: #{jw_attention_forward.1} parent=0 // pred_region
    _
  $region57: #{jw_attention_forward.1} parent=0 // pred_fallthru
    _
  // Predicated region
  $region58: #{jw_attention_forward.1} parent=0 // pred_check
    _
  $region59: #{jw_attention_forward.1} parent=0 // pred_check_branch
    %1227 = sbr.rel (0) target = $region61
  $region60: #{jw_attention_forward.1} parent=0 // pred_region
    _
  $region61: #{jw_attention_forward.1} parent=0 // pred_fallthru
    _

</llo_original>
